<compile_context>
chip_gen: v5e
topology: v5e:2x2
jax: 0.10.0
libtpu: 0.0.40
codegen_flags: <defaults>
</compile_context>

<pallas_src>
import jax
import jax.numpy as jnp
from jax.experimental import pallas as pl
from jax.experimental.pallas import tpu as pltpu

_LANES = 1024                        # lane-dense slab width (multiple of 128)
_TARGET_TILE_BYTES = 4 * 1024 * 1024  # ~4 MiB per buffer (in + out, 2x buffered)
_VMEM_LIMIT_BYTES = 32 * 1024 * 1024  # safe on v5e/v6e (128 MiB) and v7x (64 MiB)
_SMALL_FASTPATH_BYTES = 256 * 1024    # below this, plain jnp.exp2 is faster


def _pow2_kernel(x_ref, o_ref):
    # 2**x == exp2(x); elementwise on the whole VMEM tile (EUP/VPU path).
    o_ref[...] = jnp.exp2(x_ref[...])


def _pow2_slab(x2d: jax.Array, row_tile: int) -> jax.Array:
    """Tiled, auto-pipelined exp2 over a lane-dense (rows, _LANES) slab."""
    rows, lanes = x2d.shape
    grid = (pl.cdiv(rows, row_tile),)   # ragged last block: Pallas masks it
    return pl.pallas_call(
        _pow2_kernel,
        out_shape=jax.ShapeDtypeStruct((rows, lanes), x2d.dtype),
        grid=grid,
        in_specs=[pl.BlockSpec((row_tile, lanes), lambda i: (i, 0))],
        out_specs=pl.BlockSpec((row_tile, lanes), lambda i: (i, 0)),
        compiler_params=pltpu.CompilerParams(
            dimension_semantics=("parallel",),
            vmem_limit_bytes=_VMEM_LIMIT_BYTES),
    )(x2d)


def power_of_two(x: jax.Array, *, row_tile: int | None = None) -> jax.Array:
    """Compute 2**x elementwise via a tiled, pipelined Pallas TPU kernel."""
    orig_shape = x.shape

    # torch.pow(2, int_tensor) has integer semantics; here we compute in float.
    # TODO(synk): exact integer 2**x semantics for integer inputs (returns f32).
    if not jnp.issubdtype(x.dtype, jnp.floating):
        x = x.astype(jnp.float32)
    dtype = x.dtype
    itemsize = jnp.dtype(dtype).itemsize
    total = x.size

    # --- small-input fast path (incl. empty): XLA's fused exp2 wins ---------
    if total == 0 or total * itemsize < _SMALL_FASTPATH_BYTES:
        return jnp.exp2(x)

    flat = x.reshape(-1)
    main_n = (total // _LANES) * _LANES   # part that forms full 1024-wide rows
    rows = main_n // _LANES

    # --- dtype-aware row tile: ~_TARGET_TILE_BYTES per buffer ---------------
    sublane = 32 // itemsize              # 8 (f32), 16 (bf16/f16), 32 (8-bit)
    if row_tile is None:
        row_tile = max(_TARGET_TILE_BYTES // (_LANES * itemsize), sublane)
    row_tile = max((row_tile // sublane) * sublane, sublane)
    if rows <= row_tile:
        row_tile = rows                   # block == full array dims: always legal

    x2d = flat[:main_n].reshape(rows, _LANES)
    out_main = _pow2_slab(x2d, row_tile).reshape(-1)

    if main_n == total:
        return out_main.reshape(orig_shape)

    # --- < 1024-element tail: plain exp2, no full-array pad/slice passes ----
    tail = jnp.exp2(flat[main_n:])
    return jnp.concatenate([out_main, tail]).reshape(orig_shape)


if __name__ == "__main__":
    key = jax.random.PRNGKey(0)

    # 1) Module-implied small NCHW activation: exercises the small fast path.
    x = jax.random.normal(key, (2, 4, 16, 16), dtype=jnp.float32)
    y = jax.block_until_ready(power_of_two(x))
    assert y.shape == x.shape and y.dtype == x.dtype
    assert jnp.allclose(y, jnp.exp2(x), rtol=1e-6, atol=1e-6)

    # 2) Kernel path, total divisible by 1024 (single full-array block).
    k1, k2, k3 = jax.random.split(key, 3)
    x_big = jax.random.normal(k1, (4, 8, 128, 130), dtype=jnp.float32)
    y_big = jax.block_until_ready(power_of_two(x_big))
    assert jnp.allclose(y_big, jnp.exp2(x_big), rtol=1e-6, atol=1e-6)

    # 3) Multi-tile ragged grid (rows % tile != 0) via a small row-tile override.
    x_rag = jax.random.normal(k2, (1, 1, 300, 1024), dtype=jnp.float32)
    y_rag = jax.block_until_ready(power_of_two(x_rag, row_tile=64))
    assert jnp.allclose(y_rag, jnp.exp2(x_rag), rtol=1e-6, atol=1e-6)

    # 4) bf16 input with a non-multiple-of-1024 element count (tail path).
    x_bf = jax.random.normal(k3, (2, 3, 200, 301), dtype=jnp.bfloat16)
    y_bf = jax.block_until_ready(power_of_two(x_bf))
    assert y_bf.dtype == jnp.bfloat16 and y_bf.shape == x_bf.shape
    assert jnp.allclose(y_bf.astype(jnp.float32),
                        jnp.exp2(x_bf).astype(jnp.float32),
                        rtol=1e-2, atol=1e-2)

    print("KERNEL_OK")
</pallas_src>

<mosaic_0001>
module attributes {stable_mosaic.version = 11 : i64} {
  func.func @_pow2_kernel(%arg0: i32, %arg1: memref<520x1024xf32, #tpu.memory_space<vmem>>, %arg2: memref<520x1024xf32, #tpu.memory_space<vmem>>) attributes {dimension_semantics = [#tpu.dimension_semantics<parallel>], iteration_bounds = array<i64: 1>, scalar_prefetch = 0 : i64, scratch_operands = 0 : i64, tpu.core_type = #tpu.core_type<tc>, window_params = [{transform_indices = @transform_0, window_bounds = array<i64: 520, 1024>}, {transform_indices = @transform_1, window_bounds = array<i64: 520, 1024>}]} {
    %c0 = arith.constant 0 : index
    %c0_0 = arith.constant 0 : index
    %0 = vector.load %arg1[%c0, %c0_0] : memref<520x1024xf32, #tpu.memory_space<vmem>>, vector<520x1024xf32>
    %1 = math.exp2 %0 : vector<520x1024xf32>
    %c0_1 = arith.constant 0 : index
    %c0_2 = arith.constant 0 : index
    %2 = vector.load %arg2[%c0_1, %c0_2] : memref<520x1024xf32, #tpu.memory_space<vmem>>, vector<520x1024xf32>
    tpu.vector_store %arg2[%c0_1, %c0_2], %1 {strides = array<i32>} : memref<520x1024xf32, #tpu.memory_space<vmem>>, vector<520x1024xf32>,
    return
  }
  func.func @transform_0(%arg0: i32) -> (i32, i32) {
    %c0_i32 = arith.constant 0 : i32
    %c0_i32_0 = arith.constant 0 : i32
    return %arg0, %c0_i32 : i32, i32
  }
  func.func @transform_1(%arg0: i32) -> (i32, i32) {
    %c0_i32 = arith.constant 0 : i32
    %c0_i32_0 = arith.constant 0 : i32
    return %arg0, %c0_i32 : i32, i32
  }
}

</mosaic_0001>

<llo_original>
// kernel: tpu_custom_call.1
$region0: #{tpu_custom_call.1}
  #allocation0 [shape = 'u32[]', space=smem, size = 0x4, offset = 0x4, fixed_abs, tag = 'smem constant byte address 0x4 - core index']
  #allocation1 [shape = 'u32[72,128]{1,0:T(1,128)}', space=vmem, size = 0x9000, scoped, tag = 'internal scratch']
  %s0 = inlined_call_operand.hbm [shape: f32[520,1024], index: 0, kind: input, shape index: {}]
  %s1 = inlined_call_operand.hbm [shape: f32[520,1024], index: 1, kind: output, shape index: {}]
  %s2 = sld [smem:[#allocation0]]
  $region18: #{tpu_custom_call.1} parent=0
    _
  %s4 = ssub.s32 1, %s2
  %s5 = scalar_select 0, %s4, %s2
  $region1: #{tpu_custom_call.1} parent=0
    #allocation2 [shape = 'u8[2129920]{0}', space=vmem, size = 0x208000, scoped, tag = 'input window, operand 0, single buffered']
    #allocation3 [shape = 's32[1]{0}', space=sflag, size = 0x4, scoped, tag = 'scoped memory for tpu_custom_call.1']
    #allocation4 [shape = 's32[1]{0}', space=sflag, size = 0x4, scoped, tag = 'scoped memory for tpu_custom_call.1']
    #allocation5 [shape = 'u8[2129920]{0}', space=vmem, size = 0x208000, scoped, tag = 'output window, operand 0, single buffered']
    %6 = vsyncpa [#allocation3], 0
    %7 = vsyncpa [#allocation4], 0
    // Predicated region
    $region2: #{tpu_custom_call.1} parent=1 // pred_check
      _
    $region3: #{tpu_custom_call.1} parent=1 // pred_check_branch
      %9 = sbr.rel (0) target = $region5
    $region4: #{tpu_custom_call.1} parent=1 // pred_region
      %11 = vsyncadd [#allocation3], 0
      %s12 = sshll.u32 %s0, 4
      %s13 = int_to_ptr.hbm [resolvable:$true] %s12
      %s14 = sshll.u32 [#allocation2], 4
      %s15 = int_to_ptr.vmem [resolvable:$true] %s14
      %20 = dma.hbm_to_vmem [thread:$0]  %s13, 66560, %s15, [#allocation3], 1024, 1024, 64
    $region5: #{tpu_custom_call.1} parent=1 // pred_fallthru
      _
    // Predicated region
    $region6: #{tpu_custom_call.1} parent=1 // pred_check
      _
    $region7: #{tpu_custom_call.1} parent=1 // pred_check_branch
      %22 = sbr.rel (0) target = $region9
    $region8: #{tpu_custom_call.1} parent=1 // pred_region
      %24 = dma.done [#allocation3], 66560
    $region9: #{tpu_custom_call.1} parent=1 // pred_fallthru
      _
    %v25 = vld [vmem:[#allocation2] sm:$0xff]
    %v26 = vld [vmem:[#allocation2 + $0x8] sm:$0xff]
    %v27 = vld [vmem:[#allocation2 + $0x10] sm:$0xff]
    %v28 = vld [vmem:[#allocation2 + $0x18] sm:$0xff]
    %v29 = vld [vmem:[#allocation2 + $0x20] sm:$0xff]
    %v30 = vld [vmem:[#allocation2 + $0x28] sm:$0xff]
    %v31 = vld [vmem:[#allocation2 + $0x30] sm:$0xff]
    %v32 = vld [vmem:[#allocation2 + $0x38] sm:$0xff]
    %v33 = vld [vmem:[#allocation2 + $0x40] sm:$0xff]
    %v34 = vld [vmem:[#allocation2 + $0x48] sm:$0xff]
    %v35 = vld [vmem:[#allocation2 + $0x50] sm:$0xff]
    %v36 = vld [vmem:[#allocation2 + $0x58] sm:$0xff]
    %v37 = vld [vmem:[#allocation2 + $0x60] sm:$0xff]
    %v38 = vld [vmem:[#allocation2 + $0x68] sm:$0xff]
    %v39 = vld [vmem:[#allocation2 + $0x70] sm:$0xff]
    %v40 = vld [vmem:[#allocation2 + $0x78] sm:$0xff]
    %v41 = vld [vmem:[#allocation2 + $0x80] sm:$0xff]
    %v42 = vld [vmem:[#allocation2 + $0x88] sm:$0xff]
    %v43 = vld [vmem:[#allocation2 + $0x90] sm:$0xff]
    %v44 = vld [vmem:[#allocation2 + $0x98] sm:$0xff]
    %v45 = vld [vmem:[#allocation2 + $0xa0] sm:$0xff]
    %v46 = vld [vmem:[#allocation2 + $0xa8] sm:$0xff]
    %v47 = vld [vmem:[#allocation2 + $0xb0] sm:$0xff]
    %v48 = vld [vmem:[#allocation2 + $0xb8] sm:$0xff]
    %v49 = vld [vmem:[#allocation2 + $0xc0] sm:$0xff]
    %v50 = vld [vmem:[#allocation2 + $0xc8] sm:$0xff]
    %v51 = vld [vmem:[#allocation2 + $0xd0] sm:$0xff]
    %v52 = vld [vmem:[#allocation2 + $0xd8] sm:$0xff]
    %v53 = vld [vmem:[#allocation2 + $0xe0] sm:$0xff]
    %v54 = vld [vmem:[#allocation2 + $0xe8] sm:$0xff]
    %v55 = vld [vmem:[#allocation2 + $0xf0] sm:$0xff]
    %v56 = vld [vmem:[#allocation2 + $0xf8] sm:$0xff]
    %v57 = vld [vmem:[#allocation2 + $0x100] sm:$0xff]
    %v58 = vld [vmem:[#allocation2 + $0x108] sm:$0xff]
    %v59 = vld [vmem:[#allocation2 + $0x110] sm:$0xff]
    %v60 = vld [vmem:[#allocation2 + $0x118] sm:$0xff]
    %v61 = vld [vmem:[#allocation2 + $0x120] sm:$0xff]
    %v62 = vld [vmem:[#allocation2 + $0x128] sm:$0xff]
    %v63 = vld [vmem:[#allocation2 + $0x130] sm:$0xff]
    %v64 = vld [vmem:[#allocation2 + $0x138] sm:$0xff]
    %v65 = vld [vmem:[#allocation2 + $0x140] sm:$0xff]
    %v66 = vld [vmem:[#allocation2 + $0x148] sm:$0xff]
    %v67 = vld [vmem:[#allocation2 + $0x150] sm:$0xff]
    %v68 = vld [vmem:[#allocation2 + $0x158] sm:$0xff]
    %v69 = vld [vmem:[#allocation2 + $0x160] sm:$0xff]
    %v70 = vld [vmem:[#allocation2 + $0x168] sm:$0xff]
    %v71 = vld [vmem:[#allocation2 + $0x170] sm:$0xff]
    %v72 = vld [vmem:[#allocation2 + $0x178] sm:$0xff]
    %v73 = vld [vmem:[#allocation2 + $0x180] sm:$0xff]
    %v74 = vld [vmem:[#allocation2 + $0x188] sm:$0xff]
    %v75 = vld [vmem:[#allocation2 + $0x190] sm:$0xff]
    %v76 = vld [vmem:[#allocation2 + $0x198] sm:$0xff]
    %v77 = vld [vmem:[#allocation2 + $0x1a0] sm:$0xff]
    %v78 = vld [vmem:[#allocation2 + $0x1a8] sm:$0xff]
    %v79 = vld [vmem:[#allocation2 + $0x1b0] sm:$0xff]
    %v80 = vld [vmem:[#allocation2 + $0x1b8] sm:$0xff]
    %v81 = vld [vmem:[#allocation2 + $0x1c0] sm:$0xff]
    %v82 = vld [vmem:[#allocation2 + $0x1c8] sm:$0xff]
    %v83 = vld [vmem:[#allocation2 + $0x1d0] sm:$0xff]
    %v84 = vld [vmem:[#allocation2 + $0x1d8] sm:$0xff]
    %v85 = vld [vmem:[#allocation2 + $0x1e0] sm:$0xff]
    %v86 = vld [vmem:[#allocation2 + $0x1e8] sm:$0xff]
    %v87 = vld [vmem:[#allocation2 + $0x1f0] sm:$0xff]
    %v88 = vld [vmem:[#allocation2 + $0x1f8] sm:$0xff]
    %v89 = vld [vmem:[#allocation2 + $0x200] sm:$0xff]
    %v90 = vld [vmem:[#allocation2 + $0x208] sm:$0xff]
    %v91 = vld [vmem:[#allocation2 + $0x210] sm:$0xff]
    %v92 = vld [vmem:[#allocation2 + $0x218] sm:$0xff]
    %v93 = vld [vmem:[#allocation2 + $0x220] sm:$0xff]
    %v94 = vld [vmem:[#allocation2 + $0x228] sm:$0xff]
    %v95 = vld [vmem:[#allocation2 + $0x230] sm:$0xff]
    %v96 = vld [vmem:[#allocation2 + $0x238] sm:$0xff]
    %v97 = vld [vmem:[#allocation2 + $0x240] sm:$0xff]
    %v98 = vld [vmem:[#allocation2 + $0x248] sm:$0xff]
    %v99 = vld [vmem:[#allocation2 + $0x250] sm:$0xff]
    %v100 = vld [vmem:[#allocation2 + $0x258] sm:$0xff]
    %v101 = vld [vmem:[#allocation2 + $0x260] sm:$0xff]
    %v102 = vld [vmem:[#allocation2 + $0x268] sm:$0xff]
    %v103 = vld [vmem:[#allocation2 + $0x270] sm:$0xff]
    %v104 = vld [vmem:[#allocation2 + $0x278] sm:$0xff]
    %v105 = vld [vmem:[#allocation2 + $0x280] sm:$0xff]
    %v106 = vld [vmem:[#allocation2 + $0x288] sm:$0xff]
    %v107 = vld [vmem:[#allocation2 + $0x290] sm:$0xff]
    %v108 = vld [vmem:[#allocation2 + $0x298] sm:$0xff]
    %v109 = vld [vmem:[#allocation2 + $0x2a0] sm:$0xff]
    %v110 = vld [vmem:[#allocation2 + $0x2a8] sm:$0xff]
    %v111 = vld [vmem:[#allocation2 + $0x2b0] sm:$0xff]
    %v112 = vld [vmem:[#allocation2 + $0x2b8] sm:$0xff]
    %v113 = vld [vmem:[#allocation2 + $0x2c0] sm:$0xff]
    %v114 = vld [vmem:[#allocation2 + $0x2c8] sm:$0xff]
    %v115 = vld [vmem:[#allocation2 + $0x2d0] sm:$0xff]
    %v116 = vld [vmem:[#allocation2 + $0x2d8] sm:$0xff]
    %v117 = vld [vmem:[#allocation2 + $0x2e0] sm:$0xff]
    %v118 = vld [vmem:[#allocation2 + $0x2e8] sm:$0xff]
    %v119 = vld [vmem:[#allocation2 + $0x2f0] sm:$0xff]
    %v120 = vld [vmem:[#allocation2 + $0x2f8] sm:$0xff]
    %v121 = vld [vmem:[#allocation2 + $0x300] sm:$0xff]
    %v122 = vld [vmem:[#allocation2 + $0x308] sm:$0xff]
    %v123 = vld [vmem:[#allocation2 + $0x310] sm:$0xff]
    %v124 = vld [vmem:[#allocation2 + $0x318] sm:$0xff]
    %v125 = vld [vmem:[#allocation2 + $0x320] sm:$0xff]
    %v126 = vld [vmem:[#allocation2 + $0x328] sm:$0xff]
    %v127 = vld [vmem:[#allocation2 + $0x330] sm:$0xff]
    %v128 = vld [vmem:[#allocation2 + $0x338] sm:$0xff]
    %v129 = vld [vmem:[#allocation2 + $0x340] sm:$0xff]
    %v130 = vld [vmem:[#allocation2 + $0x348] sm:$0xff]
    %v131 = vld [vmem:[#allocation2 + $0x350] sm:$0xff]
    %v132 = vld [vmem:[#allocation2 + $0x358] sm:$0xff]
    %v133 = vld [vmem:[#allocation2 + $0x360] sm:$0xff]
    %v134 = vld [vmem:[#allocation2 + $0x368] sm:$0xff]
    %v135 = vld [vmem:[#allocation2 + $0x370] sm:$0xff]
    %v136 = vld [vmem:[#allocation2 + $0x378] sm:$0xff]
    %v137 = vld [vmem:[#allocation2 + $0x380] sm:$0xff]
    %v138 = vld [vmem:[#allocation2 + $0x388] sm:$0xff]
    %v139 = vld [vmem:[#allocation2 + $0x390] sm:$0xff]
    %v140 = vld [vmem:[#allocation2 + $0x398] sm:$0xff]
    %v141 = vld [vmem:[#allocation2 + $0x3a0] sm:$0xff]
    %v142 = vld [vmem:[#allocation2 + $0x3a8] sm:$0xff]
    %v143 = vld [vmem:[#allocation2 + $0x3b0] sm:$0xff]
    %v144 = vld [vmem:[#allocation2 + $0x3b8] sm:$0xff]
    %v145 = vld [vmem:[#allocation2 + $0x3c0] sm:$0xff]
    %v146 = vld [vmem:[#allocation2 + $0x3c8] sm:$0xff]
    %v147 = vld [vmem:[#allocation2 + $0x3d0] sm:$0xff]
    %v148 = vld [vmem:[#allocation2 + $0x3d8] sm:$0xff]
    %v149 = vld [vmem:[#allocation2 + $0x3e0] sm:$0xff]
    %v150 = vld [vmem:[#allocation2 + $0x3e8] sm:$0xff]
    %v151 = vld [vmem:[#allocation2 + $0x3f0] sm:$0xff]
    %v152 = vld [vmem:[#allocation2 + $0x3f8] sm:$0xff]
    %v153 = vld [vmem:[#allocation2 + $0x400] sm:$0xff]
    %v154 = vld [vmem:[#allocation2 + $0x408] sm:$0xff]
    %v155 = vld [vmem:[#allocation2 + $0x410] sm:$0xff]
    %v156 = vld [vmem:[#allocation2 + $0x418] sm:$0xff]
    %v157 = vld [vmem:[#allocation2 + $0x420] sm:$0xff]
    %v158 = vld [vmem:[#allocation2 + $0x428] sm:$0xff]
    %v159 = vld [vmem:[#allocation2 + $0x430] sm:$0xff]
    %v160 = vld [vmem:[#allocation2 + $0x438] sm:$0xff]
    %v161 = vld [vmem:[#allocation2 + $0x440] sm:$0xff]
    %v162 = vld [vmem:[#allocation2 + $0x448] sm:$0xff]
    %v163 = vld [vmem:[#allocation2 + $0x450] sm:$0xff]
    %v164 = vld [vmem:[#allocation2 + $0x458] sm:$0xff]
    %v165 = vld [vmem:[#allocation2 + $0x460] sm:$0xff]
    %v166 = vld [vmem:[#allocation2 + $0x468] sm:$0xff]
    %v167 = vld [vmem:[#allocation2 + $0x470] sm:$0xff]
    %v168 = vld [vmem:[#allocation2 + $0x478] sm:$0xff]
    %v169 = vld [vmem:[#allocation2 + $0x480] sm:$0xff]
    %v170 = vld [vmem:[#allocation2 + $0x488] sm:$0xff]
    %v171 = vld [vmem:[#allocation2 + $0x490] sm:$0xff]
    %v172 = vld [vmem:[#allocation2 + $0x498] sm:$0xff]
    %v173 = vld [vmem:[#allocation2 + $0x4a0] sm:$0xff]
    %v174 = vld [vmem:[#allocation2 + $0x4a8] sm:$0xff]
    %v175 = vld [vmem:[#allocation2 + $0x4b0] sm:$0xff]
    %v176 = vld [vmem:[#allocation2 + $0x4b8] sm:$0xff]
    %v177 = vld [vmem:[#allocation2 + $0x4c0] sm:$0xff]
    %v178 = vld [vmem:[#allocation2 + $0x4c8] sm:$0xff]
    %v179 = vld [vmem:[#allocation2 + $0x4d0] sm:$0xff]
    %v180 = vld [vmem:[#allocation2 + $0x4d8] sm:$0xff]
    %v181 = vld [vmem:[#allocation2 + $0x4e0] sm:$0xff]
    %v182 = vld [vmem:[#allocation2 + $0x4e8] sm:$0xff]
    %v183 = vld [vmem:[#allocation2 + $0x4f0] sm:$0xff]
    %v184 = vld [vmem:[#allocation2 + $0x4f8] sm:$0xff]
    %v185 = vld [vmem:[#allocation2 + $0x500] sm:$0xff]
    %v186 = vld [vmem:[#allocation2 + $0x508] sm:$0xff]
    %v187 = vld [vmem:[#allocation2 + $0x510] sm:$0xff]
    %v188 = vld [vmem:[#allocation2 + $0x518] sm:$0xff]
    %v189 = vld [vmem:[#allocation2 + $0x520] sm:$0xff]
    %v190 = vld [vmem:[#allocation2 + $0x528] sm:$0xff]
    %v191 = vld [vmem:[#allocation2 + $0x530] sm:$0xff]
    %v192 = vld [vmem:[#allocation2 + $0x538] sm:$0xff]
    %v193 = vld [vmem:[#allocation2 + $0x540] sm:$0xff]
    %v194 = vld [vmem:[#allocation2 + $0x548] sm:$0xff]
    %v195 = vld [vmem:[#allocation2 + $0x550] sm:$0xff]
    %v196 = vld [vmem:[#allocation2 + $0x558] sm:$0xff]
    %v197 = vld [vmem:[#allocation2 + $0x560] sm:$0xff]
    %v198 = vld [vmem:[#allocation2 + $0x568] sm:$0xff]
    %v199 = vld [vmem:[#allocation2 + $0x570] sm:$0xff]
    %v200 = vld [vmem:[#allocation2 + $0x578] sm:$0xff]
    %v201 = vld [vmem:[#allocation2 + $0x580] sm:$0xff]
    %v202 = vld [vmem:[#allocation2 + $0x588] sm:$0xff]
    %v203 = vld [vmem:[#allocation2 + $0x590] sm:$0xff]
    %v204 = vld [vmem:[#allocation2 + $0x598] sm:$0xff]
    %v205 = vld [vmem:[#allocation2 + $0x5a0] sm:$0xff]
    %v206 = vld [vmem:[#allocation2 + $0x5a8] sm:$0xff]
    %v207 = vld [vmem:[#allocation2 + $0x5b0] sm:$0xff]
    %v208 = vld [vmem:[#allocation2 + $0x5b8] sm:$0xff]
    %v209 = vld [vmem:[#allocation2 + $0x5c0] sm:$0xff]
    %v210 = vld [vmem:[#allocation2 + $0x5c8] sm:$0xff]
    %v211 = vld [vmem:[#allocation2 + $0x5d0] sm:$0xff]
    %v212 = vld [vmem:[#allocation2 + $0x5d8] sm:$0xff]
    %v213 = vld [vmem:[#allocation2 + $0x5e0] sm:$0xff]
    %v214 = vld [vmem:[#allocation2 + $0x5e8] sm:$0xff]
    %v215 = vld [vmem:[#allocation2 + $0x5f0] sm:$0xff]
    %v216 = vld [vmem:[#allocation2 + $0x5f8] sm:$0xff]
    %v217 = vld [vmem:[#allocation2 + $0x600] sm:$0xff]
    %v218 = vld [vmem:[#allocation2 + $0x608] sm:$0xff]
    %v219 = vld [vmem:[#allocation2 + $0x610] sm:$0xff]
    %v220 = vld [vmem:[#allocation2 + $0x618] sm:$0xff]
    %v221 = vld [vmem:[#allocation2 + $0x620] sm:$0xff]
    %v222 = vld [vmem:[#allocation2 + $0x628] sm:$0xff]
    %v223 = vld [vmem:[#allocation2 + $0x630] sm:$0xff]
    %v224 = vld [vmem:[#allocation2 + $0x638] sm:$0xff]
    %v225 = vld [vmem:[#allocation2 + $0x640] sm:$0xff]
    %v226 = vld [vmem:[#allocation2 + $0x648] sm:$0xff]
    %v227 = vld [vmem:[#allocation2 + $0x650] sm:$0xff]
    %v228 = vld [vmem:[#allocation2 + $0x658] sm:$0xff]
    %v229 = vld [vmem:[#allocation2 + $0x660] sm:$0xff]
    %v230 = vld [vmem:[#allocation2 + $0x668] sm:$0xff]
    %v231 = vld [vmem:[#allocation2 + $0x670] sm:$0xff]
    %v232 = vld [vmem:[#allocation2 + $0x678] sm:$0xff]
    %v233 = vld [vmem:[#allocation2 + $0x680] sm:$0xff]
    %v234 = vld [vmem:[#allocation2 + $0x688] sm:$0xff]
    %v235 = vld [vmem:[#allocation2 + $0x690] sm:$0xff]
    %v236 = vld [vmem:[#allocation2 + $0x698] sm:$0xff]
    %v237 = vld [vmem:[#allocation2 + $0x6a0] sm:$0xff]
    %v238 = vld [vmem:[#allocation2 + $0x6a8] sm:$0xff]
    %v239 = vld [vmem:[#allocation2 + $0x6b0] sm:$0xff]
    %v240 = vld [vmem:[#allocation2 + $0x6b8] sm:$0xff]
    %v241 = vld [vmem:[#allocation2 + $0x6c0] sm:$0xff]
    %v242 = vld [vmem:[#allocation2 + $0x6c8] sm:$0xff]
    %v243 = vld [vmem:[#allocation2 + $0x6d0] sm:$0xff]
    %v244 = vld [vmem:[#allocation2 + $0x6d8] sm:$0xff]
    %v245 = vld [vmem:[#allocation2 + $0x6e0] sm:$0xff]
    %v246 = vld [vmem:[#allocation2 + $0x6e8] sm:$0xff]
    %v247 = vld [vmem:[#allocation2 + $0x6f0] sm:$0xff]
    %v248 = vld [vmem:[#allocation2 + $0x6f8] sm:$0xff]
    %v249 = vld [vmem:[#allocation2 + $0x700] sm:$0xff]
    %v250 = vld [vmem:[#allocation2 + $0x708] sm:$0xff]
    %v251 = vld [vmem:[#allocation2 + $0x710] sm:$0xff]
    %v252 = vld [vmem:[#allocation2 + $0x718] sm:$0xff]
    %v253 = vld [vmem:[#allocation2 + $0x720] sm:$0xff]
    %v254 = vld [vmem:[#allocation2 + $0x728] sm:$0xff]
    %v255 = vld [vmem:[#allocation2 + $0x730] sm:$0xff]
    %v256 = vld [vmem:[#allocation2 + $0x738] sm:$0xff]
    %v257 = vld [vmem:[#allocation2 + $0x740] sm:$0xff]
    %v258 = vld [vmem:[#allocation2 + $0x748] sm:$0xff]
    %v259 = vld [vmem:[#allocation2 + $0x750] sm:$0xff]
    %v260 = vld [vmem:[#allocation2 + $0x758] sm:$0xff]
    %v261 = vld [vmem:[#allocation2 + $0x760] sm:$0xff]
    %v262 = vld [vmem:[#allocation2 + $0x768] sm:$0xff]
    %v263 = vld [vmem:[#allocation2 + $0x770] sm:$0xff]
    %v264 = vld [vmem:[#allocation2 + $0x778] sm:$0xff]
    %v265 = vld [vmem:[#allocation2 + $0x780] sm:$0xff]
    %v266 = vld [vmem:[#allocation2 + $0x788] sm:$0xff]
    %v267 = vld [vmem:[#allocation2 + $0x790] sm:$0xff]
    %v268 = vld [vmem:[#allocation2 + $0x798] sm:$0xff]
    %v269 = vld [vmem:[#allocation2 + $0x7a0] sm:$0xff]
    %v270 = vld [vmem:[#allocation2 + $0x7a8] sm:$0xff]
    %v271 = vld [vmem:[#allocation2 + $0x7b0] sm:$0xff]
    %v272 = vld [vmem:[#allocation2 + $0x7b8] sm:$0xff]
    %v273 = vld [vmem:[#allocation2 + $0x7c0] sm:$0xff]
    %v274 = vld [vmem:[#allocation2 + $0x7c8] sm:$0xff]
    %v275 = vld [vmem:[#allocation2 + $0x7d0] sm:$0xff]
    %v276 = vld [vmem:[#allocation2 + $0x7d8] sm:$0xff]
    %v277 = vld [vmem:[#allocation2 + $0x7e0] sm:$0xff]
    %v278 = vld [vmem:[#allocation2 + $0x7e8] sm:$0xff]
    %v279 = vld [vmem:[#allocation2 + $0x7f0] sm:$0xff]
    %v280 = vld [vmem:[#allocation2 + $0x7f8] sm:$0xff]
    %v281 = vld [vmem:[#allocation2 + $0x800] sm:$0xff]
    %v282 = vld [vmem:[#allocation2 + $0x808] sm:$0xff]
    %v283 = vld [vmem:[#allocation2 + $0x810] sm:$0xff]
    %v284 = vld [vmem:[#allocation2 + $0x818] sm:$0xff]
    %v285 = vld [vmem:[#allocation2 + $0x820] sm:$0xff]
    %v286 = vld [vmem:[#allocation2 + $0x828] sm:$0xff]
    %v287 = vld [vmem:[#allocation2 + $0x830] sm:$0xff]
    %v288 = vld [vmem:[#allocation2 + $0x838] sm:$0xff]
    %v289 = vld [vmem:[#allocation2 + $0x840] sm:$0xff]
    %v290 = vld [vmem:[#allocation2 + $0x848] sm:$0xff]
    %v291 = vld [vmem:[#allocation2 + $0x850] sm:$0xff]
    %v292 = vld [vmem:[#allocation2 + $0x858] sm:$0xff]
    %v293 = vld [vmem:[#allocation2 + $0x860] sm:$0xff]
    %v294 = vld [vmem:[#allocation2 + $0x868] sm:$0xff]
    %v295 = vld [vmem:[#allocation2 + $0x870] sm:$0xff]
    %v296 = vld [vmem:[#allocation2 + $0x878] sm:$0xff]
    %v297 = vld [vmem:[#allocation2 + $0x880] sm:$0xff]
    %v298 = vld [vmem:[#allocation2 + $0x888] sm:$0xff]
    %v299 = vld [vmem:[#allocation2 + $0x890] sm:$0xff]
    %v300 = vld [vmem:[#allocation2 + $0x898] sm:$0xff]
    %v301 = vld [vmem:[#allocation2 + $0x8a0] sm:$0xff]
    %v302 = vld [vmem:[#allocation2 + $0x8a8] sm:$0xff]
    %v303 = vld [vmem:[#allocation2 + $0x8b0] sm:$0xff]
    %v304 = vld [vmem:[#allocation2 + $0x8b8] sm:$0xff]
    %v305 = vld [vmem:[#allocation2 + $0x8c0] sm:$0xff]
    %v306 = vld [vmem:[#allocation2 + $0x8c8] sm:$0xff]
    %v307 = vld [vmem:[#allocation2 + $0x8d0] sm:$0xff]
    %v308 = vld [vmem:[#allocation2 + $0x8d8] sm:$0xff]
    %v309 = vld [vmem:[#allocation2 + $0x8e0] sm:$0xff]
    %v310 = vld [vmem:[#allocation2 + $0x8e8] sm:$0xff]
    %v311 = vld [vmem:[#allocation2 + $0x8f0] sm:$0xff]
    %v312 = vld [vmem:[#allocation2 + $0x8f8] sm:$0xff]
    %v313 = vld [vmem:[#allocation2 + $0x900] sm:$0xff]
    %v314 = vld [vmem:[#allocation2 + $0x908] sm:$0xff]
    %v315 = vld [vmem:[#allocation2 + $0x910] sm:$0xff]
    %v316 = vld [vmem:[#allocation2 + $0x918] sm:$0xff]
    %v317 = vld [vmem:[#allocation2 + $0x920] sm:$0xff]
    %v318 = vld [vmem:[#allocation2 + $0x928] sm:$0xff]
    %v319 = vld [vmem:[#allocation2 + $0x930] sm:$0xff]
    %v320 = vld [vmem:[#allocation2 + $0x938] sm:$0xff]
    %v321 = vld [vmem:[#allocation2 + $0x940] sm:$0xff]
    %v322 = vld [vmem:[#allocation2 + $0x948] sm:$0xff]
    %v323 = vld [vmem:[#allocation2 + $0x950] sm:$0xff]
    %v324 = vld [vmem:[#allocation2 + $0x958] sm:$0xff]
    %v325 = vld [vmem:[#allocation2 + $0x960] sm:$0xff]
    %v326 = vld [vmem:[#allocation2 + $0x968] sm:$0xff]
    %v327 = vld [vmem:[#allocation2 + $0x970] sm:$0xff]
    %v328 = vld [vmem:[#allocation2 + $0x978] sm:$0xff]
    %v329 = vld [vmem:[#allocation2 + $0x980] sm:$0xff]
    %v330 = vld [vmem:[#allocation2 + $0x988] sm:$0xff]
    %v331 = vld [vmem:[#allocation2 + $0x990] sm:$0xff]
    %v332 = vld [vmem:[#allocation2 + $0x998] sm:$0xff]
    %v333 = vld [vmem:[#allocation2 + $0x9a0] sm:$0xff]
    %v334 = vld [vmem:[#allocation2 + $0x9a8] sm:$0xff]
    %v335 = vld [vmem:[#allocation2 + $0x9b0] sm:$0xff]
    %v336 = vld [vmem:[#allocation2 + $0x9b8] sm:$0xff]
    %v337 = vld [vmem:[#allocation2 + $0x9c0] sm:$0xff]
    %v338 = vld [vmem:[#allocation2 + $0x9c8] sm:$0xff]
    %v339 = vld [vmem:[#allocation2 + $0x9d0] sm:$0xff]
    %v340 = vld [vmem:[#allocation2 + $0x9d8] sm:$0xff]
    %v341 = vld [vmem:[#allocation2 + $0x9e0] sm:$0xff]
    %v342 = vld [vmem:[#allocation2 + $0x9e8] sm:$0xff]
    %v343 = vld [vmem:[#allocation2 + $0x9f0] sm:$0xff]
    %v344 = vld [vmem:[#allocation2 + $0x9f8] sm:$0xff]
    %v345 = vld [vmem:[#allocation2 + $0xa00] sm:$0xff]
    %v346 = vld [vmem:[#allocation2 + $0xa08] sm:$0xff]
    %v347 = vld [vmem:[#allocation2 + $0xa10] sm:$0xff]
    %v348 = vld [vmem:[#allocation2 + $0xa18] sm:$0xff]
    %v349 = vld [vmem:[#allocation2 + $0xa20] sm:$0xff]
    %v350 = vld [vmem:[#allocation2 + $0xa28] sm:$0xff]
    %v351 = vld [vmem:[#allocation2 + $0xa30] sm:$0xff]
    %v352 = vld [vmem:[#allocation2 + $0xa38] sm:$0xff]
    %v353 = vld [vmem:[#allocation2 + $0xa40] sm:$0xff]
    %v354 = vld [vmem:[#allocation2 + $0xa48] sm:$0xff]
    %v355 = vld [vmem:[#allocation2 + $0xa50] sm:$0xff]
    %v356 = vld [vmem:[#allocation2 + $0xa58] sm:$0xff]
    %v357 = vld [vmem:[#allocation2 + $0xa60] sm:$0xff]
    %v358 = vld [vmem:[#allocation2 + $0xa68] sm:$0xff]
    %v359 = vld [vmem:[#allocation2 + $0xa70] sm:$0xff]
    %v360 = vld [vmem:[#allocation2 + $0xa78] sm:$0xff]
    %v361 = vld [vmem:[#allocation2 + $0xa80] sm:$0xff]
    %v362 = vld [vmem:[#allocation2 + $0xa88] sm:$0xff]
    %v363 = vld [vmem:[#allocation2 + $0xa90] sm:$0xff]
    %v364 = vld [vmem:[#allocation2 + $0xa98] sm:$0xff]
    %v365 = vld [vmem:[#allocation2 + $0xaa0] sm:$0xff]
    %v366 = vld [vmem:[#allocation2 + $0xaa8] sm:$0xff]
    %v367 = vld [vmem:[#allocation2 + $0xab0] sm:$0xff]
    %v368 = vld [vmem:[#allocation2 + $0xab8] sm:$0xff]
    %v369 = vld [vmem:[#allocation2 + $0xac0] sm:$0xff]
    %v370 = vld [vmem:[#allocation2 + $0xac8] sm:$0xff]
    %v371 = vld [vmem:[#allocation2 + $0xad0] sm:$0xff]
    %v372 = vld [vmem:[#allocation2 + $0xad8] sm:$0xff]
    %v373 = vld [vmem:[#allocation2 + $0xae0] sm:$0xff]
    %v374 = vld [vmem:[#allocation2 + $0xae8] sm:$0xff]
    %v375 = vld [vmem:[#allocation2 + $0xaf0] sm:$0xff]
    %v376 = vld [vmem:[#allocation2 + $0xaf8] sm:$0xff]
    %v377 = vld [vmem:[#allocation2 + $0xb00] sm:$0xff]
    %v378 = vld [vmem:[#allocation2 + $0xb08] sm:$0xff]
    %v379 = vld [vmem:[#allocation2 + $0xb10] sm:$0xff]
    %v380 = vld [vmem:[#allocation2 + $0xb18] sm:$0xff]
    %v381 = vld [vmem:[#allocation2 + $0xb20] sm:$0xff]
    %v382 = vld [vmem:[#allocation2 + $0xb28] sm:$0xff]
    %v383 = vld [vmem:[#allocation2 + $0xb30] sm:$0xff]
    %v384 = vld [vmem:[#allocation2 + $0xb38] sm:$0xff]
    %v385 = vld [vmem:[#allocation2 + $0xb40] sm:$0xff]
    %v386 = vld [vmem:[#allocation2 + $0xb48] sm:$0xff]
    %v387 = vld [vmem:[#allocation2 + $0xb50] sm:$0xff]
    %v388 = vld [vmem:[#allocation2 + $0xb58] sm:$0xff]
    %v389 = vld [vmem:[#allocation2 + $0xb60] sm:$0xff]
    %v390 = vld [vmem:[#allocation2 + $0xb68] sm:$0xff]
    %v391 = vld [vmem:[#allocation2 + $0xb70] sm:$0xff]
    %v392 = vld [vmem:[#allocation2 + $0xb78] sm:$0xff]
    %v393 = vld [vmem:[#allocation2 + $0xb80] sm:$0xff]
    %v394 = vld [vmem:[#allocation2 + $0xb88] sm:$0xff]
    %v395 = vld [vmem:[#allocation2 + $0xb90] sm:$0xff]
    %v396 = vld [vmem:[#allocation2 + $0xb98] sm:$0xff]
    %v397 = vld [vmem:[#allocation2 + $0xba0] sm:$0xff]
    %v398 = vld [vmem:[#allocation2 + $0xba8] sm:$0xff]
    %v399 = vld [vmem:[#allocation2 + $0xbb0] sm:$0xff]
    %v400 = vld [vmem:[#allocation2 + $0xbb8] sm:$0xff]
    %v401 = vld [vmem:[#allocation2 + $0xbc0] sm:$0xff]
    %v402 = vld [vmem:[#allocation2 + $0xbc8] sm:$0xff]
    %v403 = vld [vmem:[#allocation2 + $0xbd0] sm:$0xff]
    %v404 = vld [vmem:[#allocation2 + $0xbd8] sm:$0xff]
    %v405 = vld [vmem:[#allocation2 + $0xbe0] sm:$0xff]
    %v406 = vld [vmem:[#allocation2 + $0xbe8] sm:$0xff]
    %v407 = vld [vmem:[#allocation2 + $0xbf0] sm:$0xff]
    %v408 = vld [vmem:[#allocation2 + $0xbf8] sm:$0xff]
    %v409 = vld [vmem:[#allocation2 + $0xc00] sm:$0xff]
    %v410 = vld [vmem:[#allocation2 + $0xc08] sm:$0xff]
    %v411 = vld [vmem:[#allocation2 + $0xc10] sm:$0xff]
    %v412 = vld [vmem:[#allocation2 + $0xc18] sm:$0xff]
    %v413 = vld [vmem:[#allocation2 + $0xc20] sm:$0xff]
    %v414 = vld [vmem:[#allocation2 + $0xc28] sm:$0xff]
    %v415 = vld [vmem:[#allocation2 + $0xc30] sm:$0xff]
    %v416 = vld [vmem:[#allocation2 + $0xc38] sm:$0xff]
    %v417 = vld [vmem:[#allocation2 + $0xc40] sm:$0xff]
    %v418 = vld [vmem:[#allocation2 + $0xc48] sm:$0xff]
    %v419 = vld [vmem:[#allocation2 + $0xc50] sm:$0xff]
    %v420 = vld [vmem:[#allocation2 + $0xc58] sm:$0xff]
    %v421 = vld [vmem:[#allocation2 + $0xc60] sm:$0xff]
    %v422 = vld [vmem:[#allocation2 + $0xc68] sm:$0xff]
    %v423 = vld [vmem:[#allocation2 + $0xc70] sm:$0xff]
    %v424 = vld [vmem:[#allocation2 + $0xc78] sm:$0xff]
    %v425 = vld [vmem:[#allocation2 + $0xc80] sm:$0xff]
    %v426 = vld [vmem:[#allocation2 + $0xc88] sm:$0xff]
    %v427 = vld [vmem:[#allocation2 + $0xc90] sm:$0xff]
    %v428 = vld [vmem:[#allocation2 + $0xc98] sm:$0xff]
    %v429 = vld [vmem:[#allocation2 + $0xca0] sm:$0xff]
    %v430 = vld [vmem:[#allocation2 + $0xca8] sm:$0xff]
    %v431 = vld [vmem:[#allocation2 + $0xcb0] sm:$0xff]
    %v432 = vld [vmem:[#allocation2 + $0xcb8] sm:$0xff]
    %v433 = vld [vmem:[#allocation2 + $0xcc0] sm:$0xff]
    %v434 = vld [vmem:[#allocation2 + $0xcc8] sm:$0xff]
    %v435 = vld [vmem:[#allocation2 + $0xcd0] sm:$0xff]
    %v436 = vld [vmem:[#allocation2 + $0xcd8] sm:$0xff]
    %v437 = vld [vmem:[#allocation2 + $0xce0] sm:$0xff]
    %v438 = vld [vmem:[#allocation2 + $0xce8] sm:$0xff]
    %v439 = vld [vmem:[#allocation2 + $0xcf0] sm:$0xff]
    %v440 = vld [vmem:[#allocation2 + $0xcf8] sm:$0xff]
    %v441 = vld [vmem:[#allocation2 + $0xd00] sm:$0xff]
    %v442 = vld [vmem:[#allocation2 + $0xd08] sm:$0xff]
    %v443 = vld [vmem:[#allocation2 + $0xd10] sm:$0xff]
    %v444 = vld [vmem:[#allocation2 + $0xd18] sm:$0xff]
    %v445 = vld [vmem:[#allocation2 + $0xd20] sm:$0xff]
    %v446 = vld [vmem:[#allocation2 + $0xd28] sm:$0xff]
    %v447 = vld [vmem:[#allocation2 + $0xd30] sm:$0xff]
    %v448 = vld [vmem:[#allocation2 + $0xd38] sm:$0xff]
    %v449 = vld [vmem:[#allocation2 + $0xd40] sm:$0xff]
    %v450 = vld [vmem:[#allocation2 + $0xd48] sm:$0xff]
    %v451 = vld [vmem:[#allocation2 + $0xd50] sm:$0xff]
    %v452 = vld [vmem:[#allocation2 + $0xd58] sm:$0xff]
    %v453 = vld [vmem:[#allocation2 + $0xd60] sm:$0xff]
    %v454 = vld [vmem:[#allocation2 + $0xd68] sm:$0xff]
    %v455 = vld [vmem:[#allocation2 + $0xd70] sm:$0xff]
    %v456 = vld [vmem:[#allocation2 + $0xd78] sm:$0xff]
    %v457 = vld [vmem:[#allocation2 + $0xd80] sm:$0xff]
    %v458 = vld [vmem:[#allocation2 + $0xd88] sm:$0xff]
    %v459 = vld [vmem:[#allocation2 + $0xd90] sm:$0xff]
    %v460 = vld [vmem:[#allocation2 + $0xd98] sm:$0xff]
    %v461 = vld [vmem:[#allocation2 + $0xda0] sm:$0xff]
    %v462 = vld [vmem:[#allocation2 + $0xda8] sm:$0xff]
    %v463 = vld [vmem:[#allocation2 + $0xdb0] sm:$0xff]
    %v464 = vld [vmem:[#allocation2 + $0xdb8] sm:$0xff]
    %v465 = vld [vmem:[#allocation2 + $0xdc0] sm:$0xff]
    %v466 = vld [vmem:[#allocation2 + $0xdc8] sm:$0xff]
    %v467 = vld [vmem:[#allocation2 + $0xdd0] sm:$0xff]
    %v468 = vld [vmem:[#allocation2 + $0xdd8] sm:$0xff]
    %v469 = vld [vmem:[#allocation2 + $0xde0] sm:$0xff]
    %v470 = vld [vmem:[#allocation2 + $0xde8] sm:$0xff]
    %v471 = vld [vmem:[#allocation2 + $0xdf0] sm:$0xff]
    %v472 = vld [vmem:[#allocation2 + $0xdf8] sm:$0xff]
    %v473 = vld [vmem:[#allocation2 + $0xe00] sm:$0xff]
    %v474 = vld [vmem:[#allocation2 + $0xe08] sm:$0xff]
    %v475 = vld [vmem:[#allocation2 + $0xe10] sm:$0xff]
    %v476 = vld [vmem:[#allocation2 + $0xe18] sm:$0xff]
    %v477 = vld [vmem:[#allocation2 + $0xe20] sm:$0xff]
    %v478 = vld [vmem:[#allocation2 + $0xe28] sm:$0xff]
    %v479 = vld [vmem:[#allocation2 + $0xe30] sm:$0xff]
    %v480 = vld [vmem:[#allocation2 + $0xe38] sm:$0xff]
    %v481 = vld [vmem:[#allocation2 + $0xe40] sm:$0xff]
    %v482 = vld [vmem:[#allocation2 + $0xe48] sm:$0xff]
    %v483 = vld [vmem:[#allocation2 + $0xe50] sm:$0xff]
    %v484 = vld [vmem:[#allocation2 + $0xe58] sm:$0xff]
    %v485 = vld [vmem:[#allocation2 + $0xe60] sm:$0xff]
    %v486 = vld [vmem:[#allocation2 + $0xe68] sm:$0xff]
    %v487 = vld [vmem:[#allocation2 + $0xe70] sm:$0xff]
    %v488 = vld [vmem:[#allocation2 + $0xe78] sm:$0xff]
    %v489 = vld [vmem:[#allocation2 + $0xe80] sm:$0xff]
    %v490 = vld [vmem:[#allocation2 + $0xe88] sm:$0xff]
    %v491 = vld [vmem:[#allocation2 + $0xe90] sm:$0xff]
    %v492 = vld [vmem:[#allocation2 + $0xe98] sm:$0xff]
    %v493 = vld [vmem:[#allocation2 + $0xea0] sm:$0xff]
    %v494 = vld [vmem:[#allocation2 + $0xea8] sm:$0xff]
    %v495 = vld [vmem:[#allocation2 + $0xeb0] sm:$0xff]
    %v496 = vld [vmem:[#allocation2 + $0xeb8] sm:$0xff]
    %v497 = vld [vmem:[#allocation2 + $0xec0] sm:$0xff]
    %v498 = vld [vmem:[#allocation2 + $0xec8] sm:$0xff]
    %v499 = vld [vmem:[#allocation2 + $0xed0] sm:$0xff]
    %v500 = vld [vmem:[#allocation2 + $0xed8] sm:$0xff]
    %v501 = vld [vmem:[#allocation2 + $0xee0] sm:$0xff]
    %v502 = vld [vmem:[#allocation2 + $0xee8] sm:$0xff]
    %v503 = vld [vmem:[#allocation2 + $0xef0] sm:$0xff]
    %v504 = vld [vmem:[#allocation2 + $0xef8] sm:$0xff]
    %v505 = vld [vmem:[#allocation2 + $0xf00] sm:$0xff]
    %v506 = vld [vmem:[#allocation2 + $0xf08] sm:$0xff]
    %v507 = vld [vmem:[#allocation2 + $0xf10] sm:$0xff]
    %v508 = vld [vmem:[#allocation2 + $0xf18] sm:$0xff]
    %v509 = vld [vmem:[#allocation2 + $0xf20] sm:$0xff]
    %v510 = vld [vmem:[#allocation2 + $0xf28] sm:$0xff]
    %v511 = vld [vmem:[#allocation2 + $0xf30] sm:$0xff]
    %v512 = vld [vmem:[#allocation2 + $0xf38] sm:$0xff]
    %v513 = vld [vmem:[#allocation2 + $0xf40] sm:$0xff]
    %v514 = vld [vmem:[#allocation2 + $0xf48] sm:$0xff]
    %v515 = vld [vmem:[#allocation2 + $0xf50] sm:$0xff]
    %v516 = vld [vmem:[#allocation2 + $0xf58] sm:$0xff]
    %v517 = vld [vmem:[#allocation2 + $0xf60] sm:$0xff]
    %v518 = vld [vmem:[#allocation2 + $0xf68] sm:$0xff]
    %v519 = vld [vmem:[#allocation2 + $0xf70] sm:$0xff]
    %v520 = vld [vmem:[#allocation2 + $0xf78] sm:$0xff]
    %v521 = vld [vmem:[#allocation2 + $0xf80] sm:$0xff]
    %v522 = vld [vmem:[#allocation2 + $0xf88] sm:$0xff]
    %v523 = vld [vmem:[#allocation2 + $0xf90] sm:$0xff]
    %v524 = vld [vmem:[#allocation2 + $0xf98] sm:$0xff]
    %v525 = vld [vmem:[#allocation2 + $0xfa0] sm:$0xff]
    %v526 = vld [vmem:[#allocation2 + $0xfa8] sm:$0xff]
    %v527 = vld [vmem:[#allocation2 + $0xfb0] sm:$0xff]
    %v528 = vld [vmem:[#allocation2 + $0xfb8] sm:$0xff]
    %v529 = vld [vmem:[#allocation2 + $0xfc0] sm:$0xff]
    %v530 = vld [vmem:[#allocation2 + $0xfc8] sm:$0xff]
    %v531 = vld [vmem:[#allocation2 + $0xfd0] sm:$0xff]
    %v532 = vld [vmem:[#allocation2 + $0xfd8] sm:$0xff]
    %v533 = vld [vmem:[#allocation2 + $0xfe0] sm:$0xff]
    %v534 = vld [vmem:[#allocation2 + $0xfe8] sm:$0xff]
    %v535 = vld [vmem:[#allocation2 + $0xff0] sm:$0xff]
    %v536 = vld [vmem:[#allocation2 + $0xff8] sm:$0xff]
    %v537 = vld [vmem:[#allocation2 + $0x1000] sm:$0xff]
    %v538 = vld [vmem:[#allocation2 + $0x1008] sm:$0xff]
    %v539 = vld [vmem:[#allocation2 + $0x1010] sm:$0xff]
    %v540 = vld [vmem:[#allocation2 + $0x1018] sm:$0xff]
    %v541 = vld [vmem:[#allocation2 + $0x1020] sm:$0xff]
    %v542 = vld [vmem:[#allocation2 + $0x1028] sm:$0xff]
    %v543 = vld [vmem:[#allocation2 + $0x1030] sm:$0xff]
    %v544 = vld [vmem:[#allocation2 + $0x1038] sm:$0xff]
    %v545 = vpow.pop %v25
    %v546 = vpow.pop %v26
    %v547 = vpow.pop %v27
    %v548 = vpow.pop %v28
    %v549 = vpow.pop %v29
    %v550 = vpow.pop %v30
    %v551 = vpow.pop %v31
    %v552 = vpow.pop %v32
    %v553 = vpow.pop %v33
    %v554 = vpow.pop %v34
    %v555 = vpow.pop %v35
    %v556 = vpow.pop %v36
    %v557 = vpow.pop %v37
    %v558 = vpow.pop %v38
    %v559 = vpow.pop %v39
    %v560 = vpow.pop %v40
    %v561 = vpow.pop %v41
    %v562 = vpow.pop %v42
    %v563 = vpow.pop %v43
    %v564 = vpow.pop %v44
    %v565 = vpow.pop %v45
    %v566 = vpow.pop %v46
    %v567 = vpow.pop %v47
    %v568 = vpow.pop %v48
    %v569 = vpow.pop %v49
    %v570 = vpow.pop %v50
    %v571 = vpow.pop %v51
    %v572 = vpow.pop %v52
    %v573 = vpow.pop %v53
    %v574 = vpow.pop %v54
    %v575 = vpow.pop %v55
    %v576 = vpow.pop %v56
    %v577 = vpow.pop %v57
    %v578 = vpow.pop %v58
    %v579 = vpow.pop %v59
    %v580 = vpow.pop %v60
    %v581 = vpow.pop %v61
    %v582 = vpow.pop %v62
    %v583 = vpow.pop %v63
    %v584 = vpow.pop %v64
    %v585 = vpow.pop %v65
    %v586 = vpow.pop %v66
    %v587 = vpow.pop %v67
    %v588 = vpow.pop %v68
    %v589 = vpow.pop %v69
    %v590 = vpow.pop %v70
    %v591 = vpow.pop %v71
    %v592 = vpow.pop %v72
    %v593 = vpow.pop %v73
    %v594 = vpow.pop %v74
    %v595 = vpow.pop %v75
    %v596 = vpow.pop %v76
    %v597 = vpow.pop %v77
    %v598 = vpow.pop %v78
    %v599 = vpow.pop %v79
    %v600 = vpow.pop %v80
    %v601 = vpow.pop %v81
    %v602 = vpow.pop %v82
    %v603 = vpow.pop %v83
    %v604 = vpow.pop %v84
    %v605 = vpow.pop %v85
    %v606 = vpow.pop %v86
    %v607 = vpow.pop %v87
    %v608 = vpow.pop %v88
    %v609 = vpow.pop %v89
    %v610 = vpow.pop %v90
    %v611 = vpow.pop %v91
    %v612 = vpow.pop %v92
    %v613 = vpow.pop %v93
    %v614 = vpow.pop %v94
    %v615 = vpow.pop %v95
    %v616 = vpow.pop %v96
    %v617 = vpow.pop %v97
    %v618 = vpow.pop %v98
    %v619 = vpow.pop %v99
    %v620 = vpow.pop %v100
    %v621 = vpow.pop %v101
    %v622 = vpow.pop %v102
    %v623 = vpow.pop %v103
    %v624 = vpow.pop %v104
    %v625 = vpow.pop %v105
    %v626 = vpow.pop %v106
    %v627 = vpow.pop %v107
    %v628 = vpow.pop %v108
    %v629 = vpow.pop %v109
    %v630 = vpow.pop %v110
    %v631 = vpow.pop %v111
    %v632 = vpow.pop %v112
    %v633 = vpow.pop %v113
    %v634 = vpow.pop %v114
    %v635 = vpow.pop %v115
    %v636 = vpow.pop %v116
    %v637 = vpow.pop %v117
    %v638 = vpow.pop %v118
    %v639 = vpow.pop %v119
    %v640 = vpow.pop %v120
    %v641 = vpow.pop %v121
    %v642 = vpow.pop %v122
    %v643 = vpow.pop %v123
    %v644 = vpow.pop %v124
    %v645 = vpow.pop %v125
    %v646 = vpow.pop %v126
    %v647 = vpow.pop %v127
    %v648 = vpow.pop %v128
    %v649 = vpow.pop %v129
    %v650 = vpow.pop %v130
    %v651 = vpow.pop %v131
    %v652 = vpow.pop %v132
    %v653 = vpow.pop %v133
    %v654 = vpow.pop %v134
    %v655 = vpow.pop %v135
    %v656 = vpow.pop %v136
    %v657 = vpow.pop %v137
    %v658 = vpow.pop %v138
    %v659 = vpow.pop %v139
    %v660 = vpow.pop %v140
    %v661 = vpow.pop %v141
    %v662 = vpow.pop %v142
    %v663 = vpow.pop %v143
    %v664 = vpow.pop %v144
    %v665 = vpow.pop %v145
    %v666 = vpow.pop %v146
    %v667 = vpow.pop %v147
    %v668 = vpow.pop %v148
    %v669 = vpow.pop %v149
    %v670 = vpow.pop %v150
    %v671 = vpow.pop %v151
    %v672 = vpow.pop %v152
    %v673 = vpow.pop %v153
    %v674 = vpow.pop %v154
    %v675 = vpow.pop %v155
    %v676 = vpow.pop %v156
    %v677 = vpow.pop %v157
    %v678 = vpow.pop %v158
    %v679 = vpow.pop %v159
    %v680 = vpow.pop %v160
    %v681 = vpow.pop %v161
    %v682 = vpow.pop %v162
    %v683 = vpow.pop %v163
    %v684 = vpow.pop %v164
    %v685 = vpow.pop %v165
    %v686 = vpow.pop %v166
    %v687 = vpow.pop %v167
    %v688 = vpow.pop %v168
    %v689 = vpow.pop %v169
    %v690 = vpow.pop %v170
    %v691 = vpow.pop %v171
    %v692 = vpow.pop %v172
    %v693 = vpow.pop %v173
    %v694 = vpow.pop %v174
    %v695 = vpow.pop %v175
    %v696 = vpow.pop %v176
    %v697 = vpow.pop %v177
    %v698 = vpow.pop %v178
    %v699 = vpow.pop %v179
    %v700 = vpow.pop %v180
    %v701 = vpow.pop %v181
    %v702 = vpow.pop %v182
    %v703 = vpow.pop %v183
    %v704 = vpow.pop %v184
    %v705 = vpow.pop %v185
    %v706 = vpow.pop %v186
    %v707 = vpow.pop %v187
    %v708 = vpow.pop %v188
    %v709 = vpow.pop %v189
    %v710 = vpow.pop %v190
    %v711 = vpow.pop %v191
    %v712 = vpow.pop %v192
    %v713 = vpow.pop %v193
    %v714 = vpow.pop %v194
    %v715 = vpow.pop %v195
    %v716 = vpow.pop %v196
    %v717 = vpow.pop %v197
    %v718 = vpow.pop %v198
    %v719 = vpow.pop %v199
    %v720 = vpow.pop %v200
    %v721 = vpow.pop %v201
    %v722 = vpow.pop %v202
    %v723 = vpow.pop %v203
    %v724 = vpow.pop %v204
    %v725 = vpow.pop %v205
    %v726 = vpow.pop %v206
    %v727 = vpow.pop %v207
    %v728 = vpow.pop %v208
    %v729 = vpow.pop %v209
    %v730 = vpow.pop %v210
    %v731 = vpow.pop %v211
    %v732 = vpow.pop %v212
    %v733 = vpow.pop %v213
    %v734 = vpow.pop %v214
    %v735 = vpow.pop %v215
    %v736 = vpow.pop %v216
    %v737 = vpow.pop %v217
    %v738 = vpow.pop %v218
    %v739 = vpow.pop %v219
    %v740 = vpow.pop %v220
    %v741 = vpow.pop %v221
    %v742 = vpow.pop %v222
    %v743 = vpow.pop %v223
    %v744 = vpow.pop %v224
    %v745 = vpow.pop %v225
    %v746 = vpow.pop %v226
    %v747 = vpow.pop %v227
    %v748 = vpow.pop %v228
    %v749 = vpow.pop %v229
    %v750 = vpow.pop %v230
    %v751 = vpow.pop %v231
    %v752 = vpow.pop %v232
    %v753 = vpow.pop %v233
    %v754 = vpow.pop %v234
    %v755 = vpow.pop %v235
    %v756 = vpow.pop %v236
    %v757 = vpow.pop %v237
    %v758 = vpow.pop %v238
    %v759 = vpow.pop %v239
    %v760 = vpow.pop %v240
    %v761 = vpow.pop %v241
    %v762 = vpow.pop %v242
    %v763 = vpow.pop %v243
    %v764 = vpow.pop %v244
    %v765 = vpow.pop %v245
    %v766 = vpow.pop %v246
    %v767 = vpow.pop %v247
    %v768 = vpow.pop %v248
    %v769 = vpow.pop %v249
    %v770 = vpow.pop %v250
    %v771 = vpow.pop %v251
    %v772 = vpow.pop %v252
    %v773 = vpow.pop %v253
    %v774 = vpow.pop %v254
    %v775 = vpow.pop %v255
    %v776 = vpow.pop %v256
    %v777 = vpow.pop %v257
    %v778 = vpow.pop %v258
    %v779 = vpow.pop %v259
    %v780 = vpow.pop %v260
    %v781 = vpow.pop %v261
    %v782 = vpow.pop %v262
    %v783 = vpow.pop %v263
    %v784 = vpow.pop %v264
    %v785 = vpow.pop %v265
    %v786 = vpow.pop %v266
    %v787 = vpow.pop %v267
    %v788 = vpow.pop %v268
    %v789 = vpow.pop %v269
    %v790 = vpow.pop %v270
    %v791 = vpow.pop %v271
    %v792 = vpow.pop %v272
    %v793 = vpow.pop %v273
    %v794 = vpow.pop %v274
    %v795 = vpow.pop %v275
    %v796 = vpow.pop %v276
    %v797 = vpow.pop %v277
    %v798 = vpow.pop %v278
    %v799 = vpow.pop %v279
    %v800 = vpow.pop %v280
    %v801 = vpow.pop %v281
    %v802 = vpow.pop %v282
    %v803 = vpow.pop %v283
    %v804 = vpow.pop %v284
    %v805 = vpow.pop %v285
    %v806 = vpow.pop %v286
    %v807 = vpow.pop %v287
    %v808 = vpow.pop %v288
    %v809 = vpow.pop %v289
    %v810 = vpow.pop %v290
    %v811 = vpow.pop %v291
    %v812 = vpow.pop %v292
    %v813 = vpow.pop %v293
    %v814 = vpow.pop %v294
    %v815 = vpow.pop %v295
    %v816 = vpow.pop %v296
    %v817 = vpow.pop %v297
    %v818 = vpow.pop %v298
    %v819 = vpow.pop %v299
    %v820 = vpow.pop %v300
    %v821 = vpow.pop %v301
    %v822 = vpow.pop %v302
    %v823 = vpow.pop %v303
    %v824 = vpow.pop %v304
    %v825 = vpow.pop %v305
    %v826 = vpow.pop %v306
    %v827 = vpow.pop %v307
    %v828 = vpow.pop %v308
    %v829 = vpow.pop %v309
    %v830 = vpow.pop %v310
    %v831 = vpow.pop %v311
    %v832 = vpow.pop %v312
    %v833 = vpow.pop %v313
    %v834 = vpow.pop %v314
    %v835 = vpow.pop %v315
    %v836 = vpow.pop %v316
    %v837 = vpow.pop %v317
    %v838 = vpow.pop %v318
    %v839 = vpow.pop %v319
    %v840 = vpow.pop %v320
    %v841 = vpow.pop %v321
    %v842 = vpow.pop %v322
    %v843 = vpow.pop %v323
    %v844 = vpow.pop %v324
    %v845 = vpow.pop %v325
    %v846 = vpow.pop %v326
    %v847 = vpow.pop %v327
    %v848 = vpow.pop %v328
    %v849 = vpow.pop %v329
    %v850 = vpow.pop %v330
    %v851 = vpow.pop %v331
    %v852 = vpow.pop %v332
    %v853 = vpow.pop %v333
    %v854 = vpow.pop %v334
    %v855 = vpow.pop %v335
    %v856 = vpow.pop %v336
    %v857 = vpow.pop %v337
    %v858 = vpow.pop %v338
    %v859 = vpow.pop %v339
    %v860 = vpow.pop %v340
    %v861 = vpow.pop %v341
    %v862 = vpow.pop %v342
    %v863 = vpow.pop %v343
    %v864 = vpow.pop %v344
    %v865 = vpow.pop %v345
    %v866 = vpow.pop %v346
    %v867 = vpow.pop %v347
    %v868 = vpow.pop %v348
    %v869 = vpow.pop %v349
    %v870 = vpow.pop %v350
    %v871 = vpow.pop %v351
    %v872 = vpow.pop %v352
    %v873 = vpow.pop %v353
    %v874 = vpow.pop %v354
    %v875 = vpow.pop %v355
    %v876 = vpow.pop %v356
    %v877 = vpow.pop %v357
    %v878 = vpow.pop %v358
    %v879 = vpow.pop %v359
    %v880 = vpow.pop %v360
    %v881 = vpow.pop %v361
    %v882 = vpow.pop %v362
    %v883 = vpow.pop %v363
    %v884 = vpow.pop %v364
    %v885 = vpow.pop %v365
    %v886 = vpow.pop %v366
    %v887 = vpow.pop %v367
    %v888 = vpow.pop %v368
    %v889 = vpow.pop %v369
    %v890 = vpow.pop %v370
    %v891 = vpow.pop %v371
    %v892 = vpow.pop %v372
    %v893 = vpow.pop %v373
    %v894 = vpow.pop %v374
    %v895 = vpow.pop %v375
    %v896 = vpow.pop %v376
    %v897 = vpow.pop %v377
    %v898 = vpow.pop %v378
    %v899 = vpow.pop %v379
    %v900 = vpow.pop %v380
    %v901 = vpow.pop %v381
    %v902 = vpow.pop %v382
    %v903 = vpow.pop %v383
    %v904 = vpow.pop %v384
    %v905 = vpow.pop %v385
    %v906 = vpow.pop %v386
    %v907 = vpow.pop %v387
    %v908 = vpow.pop %v388
    %v909 = vpow.pop %v389
    %v910 = vpow.pop %v390
    %v911 = vpow.pop %v391
    %v912 = vpow.pop %v392
    %v913 = vpow.pop %v393
    %v914 = vpow.pop %v394
    %v915 = vpow.pop %v395
    %v916 = vpow.pop %v396
    %v917 = vpow.pop %v397
    %v918 = vpow.pop %v398
    %v919 = vpow.pop %v399
    %v920 = vpow.pop %v400
    %v921 = vpow.pop %v401
    %v922 = vpow.pop %v402
    %v923 = vpow.pop %v403
    %v924 = vpow.pop %v404
    %v925 = vpow.pop %v405
    %v926 = vpow.pop %v406
    %v927 = vpow.pop %v407
    %v928 = vpow.pop %v408
    %v929 = vpow.pop %v409
    %v930 = vpow.pop %v410
    %v931 = vpow.pop %v411
    %v932 = vpow.pop %v412
    %v933 = vpow.pop %v413
    %v934 = vpow.pop %v414
    %v935 = vpow.pop %v415
    %v936 = vpow.pop %v416
    %v937 = vpow.pop %v417
    %v938 = vpow.pop %v418
    %v939 = vpow.pop %v419
    %v940 = vpow.pop %v420
    %v941 = vpow.pop %v421
    %v942 = vpow.pop %v422
    %v943 = vpow.pop %v423
    %v944 = vpow.pop %v424
    %v945 = vpow.pop %v425
    %v946 = vpow.pop %v426
    %v947 = vpow.pop %v427
    %v948 = vpow.pop %v428
    %v949 = vpow.pop %v429
    %v950 = vpow.pop %v430
    %v951 = vpow.pop %v431
    %v952 = vpow.pop %v432
    %v953 = vpow.pop %v433
    %v954 = vpow.pop %v434
    %v955 = vpow.pop %v435
    %v956 = vpow.pop %v436
    %v957 = vpow.pop %v437
    %v958 = vpow.pop %v438
    %v959 = vpow.pop %v439
    %v960 = vpow.pop %v440
    %v961 = vpow.pop %v441
    %v962 = vpow.pop %v442
    %v963 = vpow.pop %v443
    %v964 = vpow.pop %v444
    %v965 = vpow.pop %v445
    %v966 = vpow.pop %v446
    %v967 = vpow.pop %v447
    %v968 = vpow.pop %v448
    %v969 = vpow.pop %v449
    %v970 = vpow.pop %v450
    %v971 = vpow.pop %v451
    %v972 = vpow.pop %v452
    %v973 = vpow.pop %v453
    %v974 = vpow.pop %v454
    %v975 = vpow.pop %v455
    %v976 = vpow.pop %v456
    %v977 = vpow.pop %v457
    %v978 = vpow.pop %v458
    %v979 = vpow.pop %v459
    %v980 = vpow.pop %v460
    %v981 = vpow.pop %v461
    %v982 = vpow.pop %v462
    %v983 = vpow.pop %v463
    %v984 = vpow.pop %v464
    %v985 = vpow.pop %v465
    %v986 = vpow.pop %v466
    %v987 = vpow.pop %v467
    %v988 = vpow.pop %v468
    %v989 = vpow.pop %v469
    %v990 = vpow.pop %v470
    %v991 = vpow.pop %v471
    %v992 = vpow.pop %v472
    %v993 = vpow.pop %v473
    %v994 = vpow.pop %v474
    %v995 = vpow.pop %v475
    %v996 = vpow.pop %v476
    %v997 = vpow.pop %v477
    %v998 = vpow.pop %v478
    %v999 = vpow.pop %v479
    %v1000 = vpow.pop %v480
    %v1001 = vpow.pop %v481
    %v1002 = vpow.pop %v482
    %v1003 = vpow.pop %v483
    %v1004 = vpow.pop %v484
    %v1005 = vpow.pop %v485
    %v1006 = vpow.pop %v486
    %v1007 = vpow.pop %v487
    %v1008 = vpow.pop %v488
    %v1009 = vpow.pop %v489
    %v1010 = vpow.pop %v490
    %v1011 = vpow.pop %v491
    %v1012 = vpow.pop %v492
    %v1013 = vpow.pop %v493
    %v1014 = vpow.pop %v494
    %v1015 = vpow.pop %v495
    %v1016 = vpow.pop %v496
    %v1017 = vpow.pop %v497
    %v1018 = vpow.pop %v498
    %v1019 = vpow.pop %v499
    %v1020 = vpow.pop %v500
    %v1021 = vpow.pop %v501
    %v1022 = vpow.pop %v502
    %v1023 = vpow.pop %v503
    %v1024 = vpow.pop %v504
    %v1025 = vpow.pop %v505
    %v1026 = vpow.pop %v506
    %v1027 = vpow.pop %v507
    %v1028 = vpow.pop %v508
    %v1029 = vpow.pop %v509
    %v1030 = vpow.pop %v510
    %v1031 = vpow.pop %v511
    %v1032 = vpow.pop %v512
    %v1033 = vpow.pop %v513
    %v1034 = vpow.pop %v514
    %v1035 = vpow.pop %v515
    %v1036 = vpow.pop %v516
    %v1037 = vpow.pop %v517
    %v1038 = vpow.pop %v518
    %v1039 = vpow.pop %v519
    %v1040 = vpow.pop %v520
    %v1041 = vpow.pop %v521
    %v1042 = vpow.pop %v522
    %v1043 = vpow.pop %v523
    %v1044 = vpow.pop %v524
    %v1045 = vpow.pop %v525
    %v1046 = vpow.pop %v526
    %v1047 = vpow.pop %v527
    %v1048 = vpow.pop %v528
    %v1049 = vpow.pop %v529
    %v1050 = vpow.pop %v530
    %v1051 = vpow.pop %v531
    %v1052 = vpow.pop %v532
    %v1053 = vpow.pop %v533
    %v1054 = vpow.pop %v534
    %v1055 = vpow.pop %v535
    %v1056 = vpow.pop %v536
    %v1057 = vpow.pop %v537
    %v1058 = vpow.pop %v538
    %v1059 = vpow.pop %v539
    %v1060 = vpow.pop %v540
    %v1061 = vpow.pop %v541
    %v1062 = vpow.pop %v542
    %v1063 = vpow.pop %v543
    %v1064 = vpow.pop %v544
    %1065 = vst [vmem:[#allocation5] sm:$0xff] %v545
    %1066 = vst [vmem:[#allocation5 + $0x8] sm:$0xff] %v546
    %1067 = vst [vmem:[#allocation5 + $0x10] sm:$0xff] %v547
    %1068 = vst [vmem:[#allocation5 + $0x18] sm:$0xff] %v548
    %1069 = vst [vmem:[#allocation5 + $0x20] sm:$0xff] %v549
    %1070 = vst [vmem:[#allocation5 + $0x28] sm:$0xff] %v550
    %1071 = vst [vmem:[#allocation5 + $0x30] sm:$0xff] %v551
    %1072 = vst [vmem:[#allocation5 + $0x38] sm:$0xff] %v552
    %1073 = vst [vmem:[#allocation5 + $0x40] sm:$0xff] %v553
    %1074 = vst [vmem:[#allocation5 + $0x48] sm:$0xff] %v554
    %1075 = vst [vmem:[#allocation5 + $0x50] sm:$0xff] %v555
    %1076 = vst [vmem:[#allocation5 + $0x58] sm:$0xff] %v556
    %1077 = vst [vmem:[#allocation5 + $0x60] sm:$0xff] %v557
    %1078 = vst [vmem:[#allocation5 + $0x68] sm:$0xff] %v558
    %1079 = vst [vmem:[#allocation5 + $0x70] sm:$0xff] %v559
    %1080 = vst [vmem:[#allocation5 + $0x78] sm:$0xff] %v560
    %1081 = vst [vmem:[#allocation5 + $0x80] sm:$0xff] %v561
    %1082 = vst [vmem:[#allocation5 + $0x88] sm:$0xff] %v562
    %1083 = vst [vmem:[#allocation5 + $0x90] sm:$0xff] %v563
    %1084 = vst [vmem:[#allocation5 + $0x98] sm:$0xff] %v564
    %1085 = vst [vmem:[#allocation5 + $0xa0] sm:$0xff] %v565
    %1086 = vst [vmem:[#allocation5 + $0xa8] sm:$0xff] %v566
    %1087 = vst [vmem:[#allocation5 + $0xb0] sm:$0xff] %v567
    %1088 = vst [vmem:[#allocation5 + $0xb8] sm:$0xff] %v568
    %1089 = vst [vmem:[#allocation5 + $0xc0] sm:$0xff] %v569
    %1090 = vst [vmem:[#allocation5 + $0xc8] sm:$0xff] %v570
    %1091 = vst [vmem:[#allocation5 + $0xd0] sm:$0xff] %v571
    %1092 = vst [vmem:[#allocation5 + $0xd8] sm:$0xff] %v572
    %1093 = vst [vmem:[#allocation5 + $0xe0] sm:$0xff] %v573
    %1094 = vst [vmem:[#allocation5 + $0xe8] sm:$0xff] %v574
    %1095 = vst [vmem:[#allocation5 + $0xf0] sm:$0xff] %v575
    %1096 = vst [vmem:[#allocation5 + $0xf8] sm:$0xff] %v576
    %1097 = vst [vmem:[#allocation5 + $0x100] sm:$0xff] %v577
    %1098 = vst [vmem:[#allocation5 + $0x108] sm:$0xff] %v578
    %1099 = vst [vmem:[#allocation5 + $0x110] sm:$0xff] %v579
    %1100 = vst [vmem:[#allocation5 + $0x118] sm:$0xff] %v580
    %1101 = vst [vmem:[#allocation5 + $0x120] sm:$0xff] %v581
    %1102 = vst [vmem:[#allocation5 + $0x128] sm:$0xff] %v582
    %1103 = vst [vmem:[#allocation5 + $0x130] sm:$0xff] %v583
    %1104 = vst [vmem:[#allocation5 + $0x138] sm:$0xff] %v584
    %1105 = vst [vmem:[#allocation5 + $0x140] sm:$0xff] %v585
    %1106 = vst [vmem:[#allocation5 + $0x148] sm:$0xff] %v586
    %1107 = vst [vmem:[#allocation5 + $0x150] sm:$0xff] %v587
    %1108 = vst [vmem:[#allocation5 + $0x158] sm:$0xff] %v588
    %1109 = vst [vmem:[#allocation5 + $0x160] sm:$0xff] %v589
    %1110 = vst [vmem:[#allocation5 + $0x168] sm:$0xff] %v590
    %1111 = vst [vmem:[#allocation5 + $0x170] sm:$0xff] %v591
    %1112 = vst [vmem:[#allocation5 + $0x178] sm:$0xff] %v592
    %1113 = vst [vmem:[#allocation5 + $0x180] sm:$0xff] %v593
    %1114 = vst [vmem:[#allocation5 + $0x188] sm:$0xff] %v594
    %1115 = vst [vmem:[#allocation5 + $0x190] sm:$0xff] %v595
    %1116 = vst [vmem:[#allocation5 + $0x198] sm:$0xff] %v596
    %1117 = vst [vmem:[#allocation5 + $0x1a0] sm:$0xff] %v597
    %1118 = vst [vmem:[#allocation5 + $0x1a8] sm:$0xff] %v598
    %1119 = vst [vmem:[#allocation5 + $0x1b0] sm:$0xff] %v599
    %1120 = vst [vmem:[#allocation5 + $0x1b8] sm:$0xff] %v600
    %1121 = vst [vmem:[#allocation5 + $0x1c0] sm:$0xff] %v601
    %1122 = vst [vmem:[#allocation5 + $0x1c8] sm:$0xff] %v602
    %1123 = vst [vmem:[#allocation5 + $0x1d0] sm:$0xff] %v603
    %1124 = vst [vmem:[#allocation5 + $0x1d8] sm:$0xff] %v604
    %1125 = vst [vmem:[#allocation5 + $0x1e0] sm:$0xff] %v605
    %1126 = vst [vmem:[#allocation5 + $0x1e8] sm:$0xff] %v606
    %1127 = vst [vmem:[#allocation5 + $0x1f0] sm:$0xff] %v607
    %1128 = vst [vmem:[#allocation5 + $0x1f8] sm:$0xff] %v608
    %1129 = vst [vmem:[#allocation5 + $0x200] sm:$0xff] %v609
    %1130 = vst [vmem:[#allocation5 + $0x208] sm:$0xff] %v610
    %1131 = vst [vmem:[#allocation5 + $0x210] sm:$0xff] %v611
    %1132 = vst [vmem:[#allocation5 + $0x218] sm:$0xff] %v612
    %1133 = vst [vmem:[#allocation5 + $0x220] sm:$0xff] %v613
    %1134 = vst [vmem:[#allocation5 + $0x228] sm:$0xff] %v614
    %1135 = vst [vmem:[#allocation5 + $0x230] sm:$0xff] %v615
    %1136 = vst [vmem:[#allocation5 + $0x238] sm:$0xff] %v616
    %1137 = vst [vmem:[#allocation5 + $0x240] sm:$0xff] %v617
    %1138 = vst [vmem:[#allocation5 + $0x248] sm:$0xff] %v618
    %1139 = vst [vmem:[#allocation5 + $0x250] sm:$0xff] %v619
    %1140 = vst [vmem:[#allocation5 + $0x258] sm:$0xff] %v620
    %1141 = vst [vmem:[#allocation5 + $0x260] sm:$0xff] %v621
    %1142 = vst [vmem:[#allocation5 + $0x268] sm:$0xff] %v622
    %1143 = vst [vmem:[#allocation5 + $0x270] sm:$0xff] %v623
    %1144 = vst [vmem:[#allocation5 + $0x278] sm:$0xff] %v624
    %1145 = vst [vmem:[#allocation5 + $0x280] sm:$0xff] %v625
    %1146 = vst [vmem:[#allocation5 + $0x288] sm:$0xff] %v626
    %1147 = vst [vmem:[#allocation5 + $0x290] sm:$0xff] %v627
    %1148 = vst [vmem:[#allocation5 + $0x298] sm:$0xff] %v628
    %1149 = vst [vmem:[#allocation5 + $0x2a0] sm:$0xff] %v629
    %1150 = vst [vmem:[#allocation5 + $0x2a8] sm:$0xff] %v630
    %1151 = vst [vmem:[#allocation5 + $0x2b0] sm:$0xff] %v631
    %1152 = vst [vmem:[#allocation5 + $0x2b8] sm:$0xff] %v632
    %1153 = vst [vmem:[#allocation5 + $0x2c0] sm:$0xff] %v633
    %1154 = vst [vmem:[#allocation5 + $0x2c8] sm:$0xff] %v634
    %1155 = vst [vmem:[#allocation5 + $0x2d0] sm:$0xff] %v635
    %1156 = vst [vmem:[#allocation5 + $0x2d8] sm:$0xff] %v636
    %1157 = vst [vmem:[#allocation5 + $0x2e0] sm:$0xff] %v637
    %1158 = vst [vmem:[#allocation5 + $0x2e8] sm:$0xff] %v638
    %1159 = vst [vmem:[#allocation5 + $0x2f0] sm:$0xff] %v639
    %1160 = vst [vmem:[#allocation5 + $0x2f8] sm:$0xff] %v640
    %1161 = vst [vmem:[#allocation5 + $0x300] sm:$0xff] %v641
    %1162 = vst [vmem:[#allocation5 + $0x308] sm:$0xff] %v642
    %1163 = vst [vmem:[#allocation5 + $0x310] sm:$0xff] %v643
    %1164 = vst [vmem:[#allocation5 + $0x318] sm:$0xff] %v644
    %1165 = vst [vmem:[#allocation5 + $0x320] sm:$0xff] %v645
    %1166 = vst [vmem:[#allocation5 + $0x328] sm:$0xff] %v646
    %1167 = vst [vmem:[#allocation5 + $0x330] sm:$0xff] %v647
    %1168 = vst [vmem:[#allocation5 + $0x338] sm:$0xff] %v648
    %1169 = vst [vmem:[#allocation5 + $0x340] sm:$0xff] %v649
    %1170 = vst [vmem:[#allocation5 + $0x348] sm:$0xff] %v650
    %1171 = vst [vmem:[#allocation5 + $0x350] sm:$0xff] %v651
    %1172 = vst [vmem:[#allocation5 + $0x358] sm:$0xff] %v652
    %1173 = vst [vmem:[#allocation5 + $0x360] sm:$0xff] %v653
    %1174 = vst [vmem:[#allocation5 + $0x368] sm:$0xff] %v654
    %1175 = vst [vmem:[#allocation5 + $0x370] sm:$0xff] %v655
    %1176 = vst [vmem:[#allocation5 + $0x378] sm:$0xff] %v656
    %1177 = vst [vmem:[#allocation5 + $0x380] sm:$0xff] %v657
    %1178 = vst [vmem:[#allocation5 + $0x388] sm:$0xff] %v658
    %1179 = vst [vmem:[#allocation5 + $0x390] sm:$0xff] %v659
    %1180 = vst [vmem:[#allocation5 + $0x398] sm:$0xff] %v660
    %1181 = vst [vmem:[#allocation5 + $0x3a0] sm:$0xff] %v661
    %1182 = vst [vmem:[#allocation5 + $0x3a8] sm:$0xff] %v662
    %1183 = vst [vmem:[#allocation5 + $0x3b0] sm:$0xff] %v663
    %1184 = vst [vmem:[#allocation5 + $0x3b8] sm:$0xff] %v664
    %1185 = vst [vmem:[#allocation5 + $0x3c0] sm:$0xff] %v665
    %1186 = vst [vmem:[#allocation5 + $0x3c8] sm:$0xff] %v666
    %1187 = vst [vmem:[#allocation5 + $0x3d0] sm:$0xff] %v667
    %1188 = vst [vmem:[#allocation5 + $0x3d8] sm:$0xff] %v668
    %1189 = vst [vmem:[#allocation5 + $0x3e0] sm:$0xff] %v669
    %1190 = vst [vmem:[#allocation5 + $0x3e8] sm:$0xff] %v670
    %1191 = vst [vmem:[#allocation5 + $0x3f0] sm:$0xff] %v671
    %1192 = vst [vmem:[#allocation5 + $0x3f8] sm:$0xff] %v672
    %1193 = vst [vmem:[#allocation5 + $0x400] sm:$0xff] %v673
    %1194 = vst [vmem:[#allocation5 + $0x408] sm:$0xff] %v674
    %1195 = vst [vmem:[#allocation5 + $0x410] sm:$0xff] %v675
    %1196 = vst [vmem:[#allocation5 + $0x418] sm:$0xff] %v676
    %1197 = vst [vmem:[#allocation5 + $0x420] sm:$0xff] %v677
    %1198 = vst [vmem:[#allocation5 + $0x428] sm:$0xff] %v678
    %1199 = vst [vmem:[#allocation5 + $0x430] sm:$0xff] %v679
    %1200 = vst [vmem:[#allocation5 + $0x438] sm:$0xff] %v680
    %1201 = vst [vmem:[#allocation5 + $0x440] sm:$0xff] %v681
    %1202 = vst [vmem:[#allocation5 + $0x448] sm:$0xff] %v682
    %1203 = vst [vmem:[#allocation5 + $0x450] sm:$0xff] %v683
    %1204 = vst [vmem:[#allocation5 + $0x458] sm:$0xff] %v684
    %1205 = vst [vmem:[#allocation5 + $0x460] sm:$0xff] %v685
    %1206 = vst [vmem:[#allocation5 + $0x468] sm:$0xff] %v686
    %1207 = vst [vmem:[#allocation5 + $0x470] sm:$0xff] %v687
    %1208 = vst [vmem:[#allocation5 + $0x478] sm:$0xff] %v688
    %1209 = vst [vmem:[#allocation5 + $0x480] sm:$0xff] %v689
    %1210 = vst [vmem:[#allocation5 + $0x488] sm:$0xff] %v690
    %1211 = vst [vmem:[#allocation5 + $0x490] sm:$0xff] %v691
    %1212 = vst [vmem:[#allocation5 + $0x498] sm:$0xff] %v692
    %1213 = vst [vmem:[#allocation5 + $0x4a0] sm:$0xff] %v693
    %1214 = vst [vmem:[#allocation5 + $0x4a8] sm:$0xff] %v694
    %1215 = vst [vmem:[#allocation5 + $0x4b0] sm:$0xff] %v695
    %1216 = vst [vmem:[#allocation5 + $0x4b8] sm:$0xff] %v696
    %1217 = vst [vmem:[#allocation5 + $0x4c0] sm:$0xff] %v697
    %1218 = vst [vmem:[#allocation5 + $0x4c8] sm:$0xff] %v698
    %1219 = vst [vmem:[#allocation5 + $0x4d0] sm:$0xff] %v699
    %1220 = vst [vmem:[#allocation5 + $0x4d8] sm:$0xff] %v700
    %1221 = vst [vmem:[#allocation5 + $0x4e0] sm:$0xff] %v701
    %1222 = vst [vmem:[#allocation5 + $0x4e8] sm:$0xff] %v702
    %1223 = vst [vmem:[#allocation5 + $0x4f0] sm:$0xff] %v703
    %1224 = vst [vmem:[#allocation5 + $0x4f8] sm:$0xff] %v704
    %1225 = vst [vmem:[#allocation5 + $0x500] sm:$0xff] %v705
    %1226 = vst [vmem:[#allocation5 + $0x508] sm:$0xff] %v706
    %1227 = vst [vmem:[#allocation5 + $0x510] sm:$0xff] %v707
    %1228 = vst [vmem:[#allocation5 + $0x518] sm:$0xff] %v708
    %1229 = vst [vmem:[#allocation5 + $0x520] sm:$0xff] %v709
    %1230 = vst [vmem:[#allocation5 + $0x528] sm:$0xff] %v710
    %1231 = vst [vmem:[#allocation5 + $0x530] sm:$0xff] %v711
    %1232 = vst [vmem:[#allocation5 + $0x538] sm:$0xff] %v712
    %1233 = vst [vmem:[#allocation5 + $0x540] sm:$0xff] %v713
    %1234 = vst [vmem:[#allocation5 + $0x548] sm:$0xff] %v714
    %1235 = vst [vmem:[#allocation5 + $0x550] sm:$0xff] %v715
    %1236 = vst [vmem:[#allocation5 + $0x558] sm:$0xff] %v716
    %1237 = vst [vmem:[#allocation5 + $0x560] sm:$0xff] %v717
    %1238 = vst [vmem:[#allocation5 + $0x568] sm:$0xff] %v718
    %1239 = vst [vmem:[#allocation5 + $0x570] sm:$0xff] %v719
    %1240 = vst [vmem:[#allocation5 + $0x578] sm:$0xff] %v720
    %1241 = vst [vmem:[#allocation5 + $0x580] sm:$0xff] %v721
    %1242 = vst [vmem:[#allocation5 + $0x588] sm:$0xff] %v722
    %1243 = vst [vmem:[#allocation5 + $0x590] sm:$0xff] %v723
    %1244 = vst [vmem:[#allocation5 + $0x598] sm:$0xff] %v724
    %1245 = vst [vmem:[#allocation5 + $0x5a0] sm:$0xff] %v725
    %1246 = vst [vmem:[#allocation5 + $0x5a8] sm:$0xff] %v726
    %1247 = vst [vmem:[#allocation5 + $0x5b0] sm:$0xff] %v727
    %1248 = vst [vmem:[#allocation5 + $0x5b8] sm:$0xff] %v728
    %1249 = vst [vmem:[#allocation5 + $0x5c0] sm:$0xff] %v729
    %1250 = vst [vmem:[#allocation5 + $0x5c8] sm:$0xff] %v730
    %1251 = vst [vmem:[#allocation5 + $0x5d0] sm:$0xff] %v731
    %1252 = vst [vmem:[#allocation5 + $0x5d8] sm:$0xff] %v732
    %1253 = vst [vmem:[#allocation5 + $0x5e0] sm:$0xff] %v733
    %1254 = vst [vmem:[#allocation5 + $0x5e8] sm:$0xff] %v734
    %1255 = vst [vmem:[#allocation5 + $0x5f0] sm:$0xff] %v735
    %1256 = vst [vmem:[#allocation5 + $0x5f8] sm:$0xff] %v736
    %1257 = vst [vmem:[#allocation5 + $0x600] sm:$0xff] %v737
    %1258 = vst [vmem:[#allocation5 + $0x608] sm:$0xff] %v738
    %1259 = vst [vmem:[#allocation5 + $0x610] sm:$0xff] %v739
    %1260 = vst [vmem:[#allocation5 + $0x618] sm:$0xff] %v740
    %1261 = vst [vmem:[#allocation5 + $0x620] sm:$0xff] %v741
    %1262 = vst [vmem:[#allocation5 + $0x628] sm:$0xff] %v742
    %1263 = vst [vmem:[#allocation5 + $0x630] sm:$0xff] %v743
    %1264 = vst [vmem:[#allocation5 + $0x638] sm:$0xff] %v744
    %1265 = vst [vmem:[#allocation5 + $0x640] sm:$0xff] %v745
    %1266 = vst [vmem:[#allocation5 + $0x648] sm:$0xff] %v746
    %1267 = vst [vmem:[#allocation5 + $0x650] sm:$0xff] %v747
    %1268 = vst [vmem:[#allocation5 + $0x658] sm:$0xff] %v748
    %1269 = vst [vmem:[#allocation5 + $0x660] sm:$0xff] %v749
    %1270 = vst [vmem:[#allocation5 + $0x668] sm:$0xff] %v750
    %1271 = vst [vmem:[#allocation5 + $0x670] sm:$0xff] %v751
    %1272 = vst [vmem:[#allocation5 + $0x678] sm:$0xff] %v752
    %1273 = vst [vmem:[#allocation5 + $0x680] sm:$0xff] %v753
    %1274 = vst [vmem:[#allocation5 + $0x688] sm:$0xff] %v754
    %1275 = vst [vmem:[#allocation5 + $0x690] sm:$0xff] %v755
    %1276 = vst [vmem:[#allocation5 + $0x698] sm:$0xff] %v756
    %1277 = vst [vmem:[#allocation5 + $0x6a0] sm:$0xff] %v757
    %1278 = vst [vmem:[#allocation5 + $0x6a8] sm:$0xff] %v758
    %1279 = vst [vmem:[#allocation5 + $0x6b0] sm:$0xff] %v759
    %1280 = vst [vmem:[#allocation5 + $0x6b8] sm:$0xff] %v760
    %1281 = vst [vmem:[#allocation5 + $0x6c0] sm:$0xff] %v761
    %1282 = vst [vmem:[#allocation5 + $0x6c8] sm:$0xff] %v762
    %1283 = vst [vmem:[#allocation5 + $0x6d0] sm:$0xff] %v763
    %1284 = vst [vmem:[#allocation5 + $0x6d8] sm:$0xff] %v764
    %1285 = vst [vmem:[#allocation5 + $0x6e0] sm:$0xff] %v765
    %1286 = vst [vmem:[#allocation5 + $0x6e8] sm:$0xff] %v766
    %1287 = vst [vmem:[#allocation5 + $0x6f0] sm:$0xff] %v767
    %1288 = vst [vmem:[#allocation5 + $0x6f8] sm:$0xff] %v768
    %1289 = vst [vmem:[#allocation5 + $0x700] sm:$0xff] %v769
    %1290 = vst [vmem:[#allocation5 + $0x708] sm:$0xff] %v770
    %1291 = vst [vmem:[#allocation5 + $0x710] sm:$0xff] %v771
    %1292 = vst [vmem:[#allocation5 + $0x718] sm:$0xff] %v772
    %1293 = vst [vmem:[#allocation5 + $0x720] sm:$0xff] %v773
    %1294 = vst [vmem:[#allocation5 + $0x728] sm:$0xff] %v774
    %1295 = vst [vmem:[#allocation5 + $0x730] sm:$0xff] %v775
    %1296 = vst [vmem:[#allocation5 + $0x738] sm:$0xff] %v776
    %1297 = vst [vmem:[#allocation5 + $0x740] sm:$0xff] %v777
    %1298 = vst [vmem:[#allocation5 + $0x748] sm:$0xff] %v778
    %1299 = vst [vmem:[#allocation5 + $0x750] sm:$0xff] %v779
    %1300 = vst [vmem:[#allocation5 + $0x758] sm:$0xff] %v780
    %1301 = vst [vmem:[#allocation5 + $0x760] sm:$0xff] %v781
    %1302 = vst [vmem:[#allocation5 + $0x768] sm:$0xff] %v782
    %1303 = vst [vmem:[#allocation5 + $0x770] sm:$0xff] %v783
    %1304 = vst [vmem:[#allocation5 + $0x778] sm:$0xff] %v784
    %1305 = vst [vmem:[#allocation5 + $0x780] sm:$0xff] %v785
    %1306 = vst [vmem:[#allocation5 + $0x788] sm:$0xff] %v786
    %1307 = vst [vmem:[#allocation5 + $0x790] sm:$0xff] %v787
    %1308 = vst [vmem:[#allocation5 + $0x798] sm:$0xff] %v788
    %1309 = vst [vmem:[#allocation5 + $0x7a0] sm:$0xff] %v789
    %1310 = vst [vmem:[#allocation5 + $0x7a8] sm:$0xff] %v790
    %1311 = vst [vmem:[#allocation5 + $0x7b0] sm:$0xff] %v791
    %1312 = vst [vmem:[#allocation5 + $0x7b8] sm:$0xff] %v792
    %1313 = vst [vmem:[#allocation5 + $0x7c0] sm:$0xff] %v793
    %1314 = vst [vmem:[#allocation5 + $0x7c8] sm:$0xff] %v794
    %1315 = vst [vmem:[#allocation5 + $0x7d0] sm:$0xff] %v795
    %1316 = vst [vmem:[#allocation5 + $0x7d8] sm:$0xff] %v796
    %1317 = vst [vmem:[#allocation5 + $0x7e0] sm:$0xff] %v797
    %1318 = vst [vmem:[#allocation5 + $0x7e8] sm:$0xff] %v798
    %1319 = vst [vmem:[#allocation5 + $0x7f0] sm:$0xff] %v799
    %1320 = vst [vmem:[#allocation5 + $0x7f8] sm:$0xff] %v800
    %1321 = vst [vmem:[#allocation5 + $0x800] sm:$0xff] %v801
    %1322 = vst [vmem:[#allocation5 + $0x808] sm:$0xff] %v802
    %1323 = vst [vmem:[#allocation5 + $0x810] sm:$0xff] %v803
    %1324 = vst [vmem:[#allocation5 + $0x818] sm:$0xff] %v804
    %1325 = vst [vmem:[#allocation5 + $0x820] sm:$0xff] %v805
    %1326 = vst [vmem:[#allocation5 + $0x828] sm:$0xff] %v806
    %1327 = vst [vmem:[#allocation5 + $0x830] sm:$0xff] %v807
    %1328 = vst [vmem:[#allocation5 + $0x838] sm:$0xff] %v808
    %1329 = vst [vmem:[#allocation5 + $0x840] sm:$0xff] %v809
    %1330 = vst [vmem:[#allocation5 + $0x848] sm:$0xff] %v810
    %1331 = vst [vmem:[#allocation5 + $0x850] sm:$0xff] %v811
    %1332 = vst [vmem:[#allocation5 + $0x858] sm:$0xff] %v812
    %1333 = vst [vmem:[#allocation5 + $0x860] sm:$0xff] %v813
    %1334 = vst [vmem:[#allocation5 + $0x868] sm:$0xff] %v814
    %1335 = vst [vmem:[#allocation5 + $0x870] sm:$0xff] %v815
    %1336 = vst [vmem:[#allocation5 + $0x878] sm:$0xff] %v816
    %1337 = vst [vmem:[#allocation5 + $0x880] sm:$0xff] %v817
    %1338 = vst [vmem:[#allocation5 + $0x888] sm:$0xff] %v818
    %1339 = vst [vmem:[#allocation5 + $0x890] sm:$0xff] %v819
    %1340 = vst [vmem:[#allocation5 + $0x898] sm:$0xff] %v820
    %1341 = vst [vmem:[#allocation5 + $0x8a0] sm:$0xff] %v821
    %1342 = vst [vmem:[#allocation5 + $0x8a8] sm:$0xff] %v822
    %1343 = vst [vmem:[#allocation5 + $0x8b0] sm:$0xff] %v823
    %1344 = vst [vmem:[#allocation5 + $0x8b8] sm:$0xff] %v824
    %1345 = vst [vmem:[#allocation5 + $0x8c0] sm:$0xff] %v825
    %1346 = vst [vmem:[#allocation5 + $0x8c8] sm:$0xff] %v826
    %1347 = vst [vmem:[#allocation5 + $0x8d0] sm:$0xff] %v827
    %1348 = vst [vmem:[#allocation5 + $0x8d8] sm:$0xff] %v828
    %1349 = vst [vmem:[#allocation5 + $0x8e0] sm:$0xff] %v829
    %1350 = vst [vmem:[#allocation5 + $0x8e8] sm:$0xff] %v830
    %1351 = vst [vmem:[#allocation5 + $0x8f0] sm:$0xff] %v831
    %1352 = vst [vmem:[#allocation5 + $0x8f8] sm:$0xff] %v832
    %1353 = vst [vmem:[#allocation5 + $0x900] sm:$0xff] %v833
    %1354 = vst [vmem:[#allocation5 + $0x908] sm:$0xff] %v834
    %1355 = vst [vmem:[#allocation5 + $0x910] sm:$0xff] %v835
    %1356 = vst [vmem:[#allocation5 + $0x918] sm:$0xff] %v836
    %1357 = vst [vmem:[#allocation5 + $0x920] sm:$0xff] %v837
    %1358 = vst [vmem:[#allocation5 + $0x928] sm:$0xff] %v838
    %1359 = vst [vmem:[#allocation5 + $0x930] sm:$0xff] %v839
    %1360 = vst [vmem:[#allocation5 + $0x938] sm:$0xff] %v840
    %1361 = vst [vmem:[#allocation5 + $0x940] sm:$0xff] %v841
    %1362 = vst [vmem:[#allocation5 + $0x948] sm:$0xff] %v842
    %1363 = vst [vmem:[#allocation5 + $0x950] sm:$0xff] %v843
    %1364 = vst [vmem:[#allocation5 + $0x958] sm:$0xff] %v844
    %1365 = vst [vmem:[#allocation5 + $0x960] sm:$0xff] %v845
    %1366 = vst [vmem:[#allocation5 + $0x968] sm:$0xff] %v846
    %1367 = vst [vmem:[#allocation5 + $0x970] sm:$0xff] %v847
    %1368 = vst [vmem:[#allocation5 + $0x978] sm:$0xff] %v848
    %1369 = vst [vmem:[#allocation5 + $0x980] sm:$0xff] %v849
    %1370 = vst [vmem:[#allocation5 + $0x988] sm:$0xff] %v850
    %1371 = vst [vmem:[#allocation5 + $0x990] sm:$0xff] %v851
    %1372 = vst [vmem:[#allocation5 + $0x998] sm:$0xff] %v852
    %1373 = vst [vmem:[#allocation5 + $0x9a0] sm:$0xff] %v853
    %1374 = vst [vmem:[#allocation5 + $0x9a8] sm:$0xff] %v854
    %1375 = vst [vmem:[#allocation5 + $0x9b0] sm:$0xff] %v855
    %1376 = vst [vmem:[#allocation5 + $0x9b8] sm:$0xff] %v856
    %1377 = vst [vmem:[#allocation5 + $0x9c0] sm:$0xff] %v857
    %1378 = vst [vmem:[#allocation5 + $0x9c8] sm:$0xff] %v858
    %1379 = vst [vmem:[#allocation5 + $0x9d0] sm:$0xff] %v859
    %1380 = vst [vmem:[#allocation5 + $0x9d8] sm:$0xff] %v860
    %1381 = vst [vmem:[#allocation5 + $0x9e0] sm:$0xff] %v861
    %1382 = vst [vmem:[#allocation5 + $0x9e8] sm:$0xff] %v862
    %1383 = vst [vmem:[#allocation5 + $0x9f0] sm:$0xff] %v863
    %1384 = vst [vmem:[#allocation5 + $0x9f8] sm:$0xff] %v864
    %1385 = vst [vmem:[#allocation5 + $0xa00] sm:$0xff] %v865
    %1386 = vst [vmem:[#allocation5 + $0xa08] sm:$0xff] %v866
    %1387 = vst [vmem:[#allocation5 + $0xa10] sm:$0xff] %v867
    %1388 = vst [vmem:[#allocation5 + $0xa18] sm:$0xff] %v868
    %1389 = vst [vmem:[#allocation5 + $0xa20] sm:$0xff] %v869
    %1390 = vst [vmem:[#allocation5 + $0xa28] sm:$0xff] %v870
    %1391 = vst [vmem:[#allocation5 + $0xa30] sm:$0xff] %v871
    %1392 = vst [vmem:[#allocation5 + $0xa38] sm:$0xff] %v872
    %1393 = vst [vmem:[#allocation5 + $0xa40] sm:$0xff] %v873
    %1394 = vst [vmem:[#allocation5 + $0xa48] sm:$0xff] %v874
    %1395 = vst [vmem:[#allocation5 + $0xa50] sm:$0xff] %v875
    %1396 = vst [vmem:[#allocation5 + $0xa58] sm:$0xff] %v876
    %1397 = vst [vmem:[#allocation5 + $0xa60] sm:$0xff] %v877
    %1398 = vst [vmem:[#allocation5 + $0xa68] sm:$0xff] %v878
    %1399 = vst [vmem:[#allocation5 + $0xa70] sm:$0xff] %v879
    %1400 = vst [vmem:[#allocation5 + $0xa78] sm:$0xff] %v880
    %1401 = vst [vmem:[#allocation5 + $0xa80] sm:$0xff] %v881
    %1402 = vst [vmem:[#allocation5 + $0xa88] sm:$0xff] %v882
    %1403 = vst [vmem:[#allocation5 + $0xa90] sm:$0xff] %v883
    %1404 = vst [vmem:[#allocation5 + $0xa98] sm:$0xff] %v884
    %1405 = vst [vmem:[#allocation5 + $0xaa0] sm:$0xff] %v885
    %1406 = vst [vmem:[#allocation5 + $0xaa8] sm:$0xff] %v886
    %1407 = vst [vmem:[#allocation5 + $0xab0] sm:$0xff] %v887
    %1408 = vst [vmem:[#allocation5 + $0xab8] sm:$0xff] %v888
    %1409 = vst [vmem:[#allocation5 + $0xac0] sm:$0xff] %v889
    %1410 = vst [vmem:[#allocation5 + $0xac8] sm:$0xff] %v890
    %1411 = vst [vmem:[#allocation5 + $0xad0] sm:$0xff] %v891
    %1412 = vst [vmem:[#allocation5 + $0xad8] sm:$0xff] %v892
    %1413 = vst [vmem:[#allocation5 + $0xae0] sm:$0xff] %v893
    %1414 = vst [vmem:[#allocation5 + $0xae8] sm:$0xff] %v894
    %1415 = vst [vmem:[#allocation5 + $0xaf0] sm:$0xff] %v895
    %1416 = vst [vmem:[#allocation5 + $0xaf8] sm:$0xff] %v896
    %1417 = vst [vmem:[#allocation5 + $0xb00] sm:$0xff] %v897
    %1418 = vst [vmem:[#allocation5 + $0xb08] sm:$0xff] %v898
    %1419 = vst [vmem:[#allocation5 + $0xb10] sm:$0xff] %v899
    %1420 = vst [vmem:[#allocation5 + $0xb18] sm:$0xff] %v900
    %1421 = vst [vmem:[#allocation5 + $0xb20] sm:$0xff] %v901
    %1422 = vst [vmem:[#allocation5 + $0xb28] sm:$0xff] %v902
    %1423 = vst [vmem:[#allocation5 + $0xb30] sm:$0xff] %v903
    %1424 = vst [vmem:[#allocation5 + $0xb38] sm:$0xff] %v904
    %1425 = vst [vmem:[#allocation5 + $0xb40] sm:$0xff] %v905
    %1426 = vst [vmem:[#allocation5 + $0xb48] sm:$0xff] %v906
    %1427 = vst [vmem:[#allocation5 + $0xb50] sm:$0xff] %v907
    %1428 = vst [vmem:[#allocation5 + $0xb58] sm:$0xff] %v908
    %1429 = vst [vmem:[#allocation5 + $0xb60] sm:$0xff] %v909
    %1430 = vst [vmem:[#allocation5 + $0xb68] sm:$0xff] %v910
    %1431 = vst [vmem:[#allocation5 + $0xb70] sm:$0xff] %v911
    %1432 = vst [vmem:[#allocation5 + $0xb78] sm:$0xff] %v912
    %1433 = vst [vmem:[#allocation5 + $0xb80] sm:$0xff] %v913
    %1434 = vst [vmem:[#allocation5 + $0xb88] sm:$0xff] %v914
    %1435 = vst [vmem:[#allocation5 + $0xb90] sm:$0xff] %v915
    %1436 = vst [vmem:[#allocation5 + $0xb98] sm:$0xff] %v916
    %1437 = vst [vmem:[#allocation5 + $0xba0] sm:$0xff] %v917
    %1438 = vst [vmem:[#allocation5 + $0xba8] sm:$0xff] %v918
    %1439 = vst [vmem:[#allocation5 + $0xbb0] sm:$0xff] %v919
    %1440 = vst [vmem:[#allocation5 + $0xbb8] sm:$0xff] %v920
    %1441 = vst [vmem:[#allocation5 + $0xbc0] sm:$0xff] %v921
    %1442 = vst [vmem:[#allocation5 + $0xbc8] sm:$0xff] %v922
    %1443 = vst [vmem:[#allocation5 + $0xbd0] sm:$0xff] %v923
    %1444 = vst [vmem:[#allocation5 + $0xbd8] sm:$0xff] %v924
    %1445 = vst [vmem:[#allocation5 + $0xbe0] sm:$0xff] %v925
    %1446 = vst [vmem:[#allocation5 + $0xbe8] sm:$0xff] %v926
    %1447 = vst [vmem:[#allocation5 + $0xbf0] sm:$0xff] %v927
    %1448 = vst [vmem:[#allocation5 + $0xbf8] sm:$0xff] %v928
    %1449 = vst [vmem:[#allocation5 + $0xc00] sm:$0xff] %v929
    %1450 = vst [vmem:[#allocation5 + $0xc08] sm:$0xff] %v930
    %1451 = vst [vmem:[#allocation5 + $0xc10] sm:$0xff] %v931
    %1452 = vst [vmem:[#allocation5 + $0xc18] sm:$0xff] %v932
    %1453 = vst [vmem:[#allocation5 + $0xc20] sm:$0xff] %v933
    %1454 = vst [vmem:[#allocation5 + $0xc28] sm:$0xff] %v934
    %1455 = vst [vmem:[#allocation5 + $0xc30] sm:$0xff] %v935
    %1456 = vst [vmem:[#allocation5 + $0xc38] sm:$0xff] %v936
    %1457 = vst [vmem:[#allocation5 + $0xc40] sm:$0xff] %v937
    %1458 = vst [vmem:[#allocation5 + $0xc48] sm:$0xff] %v938
    %1459 = vst [vmem:[#allocation5 + $0xc50] sm:$0xff] %v939
    %1460 = vst [vmem:[#allocation5 + $0xc58] sm:$0xff] %v940
    %1461 = vst [vmem:[#allocation5 + $0xc60] sm:$0xff] %v941
    %1462 = vst [vmem:[#allocation5 + $0xc68] sm:$0xff] %v942
    %1463 = vst [vmem:[#allocation5 + $0xc70] sm:$0xff] %v943
    %1464 = vst [vmem:[#allocation5 + $0xc78] sm:$0xff] %v944
    %1465 = vst [vmem:[#allocation5 + $0xc80] sm:$0xff] %v945
    %1466 = vst [vmem:[#allocation5 + $0xc88] sm:$0xff] %v946
    %1467 = vst [vmem:[#allocation5 + $0xc90] sm:$0xff] %v947
    %1468 = vst [vmem:[#allocation5 + $0xc98] sm:$0xff] %v948
    %1469 = vst [vmem:[#allocation5 + $0xca0] sm:$0xff] %v949
    %1470 = vst [vmem:[#allocation5 + $0xca8] sm:$0xff] %v950
    %1471 = vst [vmem:[#allocation5 + $0xcb0] sm:$0xff] %v951
    %1472 = vst [vmem:[#allocation5 + $0xcb8] sm:$0xff] %v952
    %1473 = vst [vmem:[#allocation5 + $0xcc0] sm:$0xff] %v953
    %1474 = vst [vmem:[#allocation5 + $0xcc8] sm:$0xff] %v954
    %1475 = vst [vmem:[#allocation5 + $0xcd0] sm:$0xff] %v955
    %1476 = vst [vmem:[#allocation5 + $0xcd8] sm:$0xff] %v956
    %1477 = vst [vmem:[#allocation5 + $0xce0] sm:$0xff] %v957
    %1478 = vst [vmem:[#allocation5 + $0xce8] sm:$0xff] %v958
    %1479 = vst [vmem:[#allocation5 + $0xcf0] sm:$0xff] %v959
    %1480 = vst [vmem:[#allocation5 + $0xcf8] sm:$0xff] %v960
    %1481 = vst [vmem:[#allocation5 + $0xd00] sm:$0xff] %v961
    %1482 = vst [vmem:[#allocation5 + $0xd08] sm:$0xff] %v962
    %1483 = vst [vmem:[#allocation5 + $0xd10] sm:$0xff] %v963
    %1484 = vst [vmem:[#allocation5 + $0xd18] sm:$0xff] %v964
    %1485 = vst [vmem:[#allocation5 + $0xd20] sm:$0xff] %v965
    %1486 = vst [vmem:[#allocation5 + $0xd28] sm:$0xff] %v966
    %1487 = vst [vmem:[#allocation5 + $0xd30] sm:$0xff] %v967
    %1488 = vst [vmem:[#allocation5 + $0xd38] sm:$0xff] %v968
    %1489 = vst [vmem:[#allocation5 + $0xd40] sm:$0xff] %v969
    %1490 = vst [vmem:[#allocation5 + $0xd48] sm:$0xff] %v970
    %1491 = vst [vmem:[#allocation5 + $0xd50] sm:$0xff] %v971
    %1492 = vst [vmem:[#allocation5 + $0xd58] sm:$0xff] %v972
    %1493 = vst [vmem:[#allocation5 + $0xd60] sm:$0xff] %v973
    %1494 = vst [vmem:[#allocation5 + $0xd68] sm:$0xff] %v974
    %1495 = vst [vmem:[#allocation5 + $0xd70] sm:$0xff] %v975
    %1496 = vst [vmem:[#allocation5 + $0xd78] sm:$0xff] %v976
    %1497 = vst [vmem:[#allocation5 + $0xd80] sm:$0xff] %v977
    %1498 = vst [vmem:[#allocation5 + $0xd88] sm:$0xff] %v978
    %1499 = vst [vmem:[#allocation5 + $0xd90] sm:$0xff] %v979
    %1500 = vst [vmem:[#allocation5 + $0xd98] sm:$0xff] %v980
    %1501 = vst [vmem:[#allocation5 + $0xda0] sm:$0xff] %v981
    %1502 = vst [vmem:[#allocation5 + $0xda8] sm:$0xff] %v982
    %1503 = vst [vmem:[#allocation5 + $0xdb0] sm:$0xff] %v983
    %1504 = vst [vmem:[#allocation5 + $0xdb8] sm:$0xff] %v984
    %1505 = vst [vmem:[#allocation5 + $0xdc0] sm:$0xff] %v985
    %1506 = vst [vmem:[#allocation5 + $0xdc8] sm:$0xff] %v986
    %1507 = vst [vmem:[#allocation5 + $0xdd0] sm:$0xff] %v987
    %1508 = vst [vmem:[#allocation5 + $0xdd8] sm:$0xff] %v988
    %1509 = vst [vmem:[#allocation5 + $0xde0] sm:$0xff] %v989
    %1510 = vst [vmem:[#allocation5 + $0xde8] sm:$0xff] %v990
    %1511 = vst [vmem:[#allocation5 + $0xdf0] sm:$0xff] %v991
    %1512 = vst [vmem:[#allocation5 + $0xdf8] sm:$0xff] %v992
    %1513 = vst [vmem:[#allocation5 + $0xe00] sm:$0xff] %v993
    %1514 = vst [vmem:[#allocation5 + $0xe08] sm:$0xff] %v994
    %1515 = vst [vmem:[#allocation5 + $0xe10] sm:$0xff] %v995
    %1516 = vst [vmem:[#allocation5 + $0xe18] sm:$0xff] %v996
    %1517 = vst [vmem:[#allocation5 + $0xe20] sm:$0xff] %v997
    %1518 = vst [vmem:[#allocation5 + $0xe28] sm:$0xff] %v998
    %1519 = vst [vmem:[#allocation5 + $0xe30] sm:$0xff] %v999
    %1520 = vst [vmem:[#allocation5 + $0xe38] sm:$0xff] %v1000
    %1521 = vst [vmem:[#allocation5 + $0xe40] sm:$0xff] %v1001
    %1522 = vst [vmem:[#allocation5 + $0xe48] sm:$0xff] %v1002
    %1523 = vst [vmem:[#allocation5 + $0xe50] sm:$0xff] %v1003
    %1524 = vst [vmem:[#allocation5 + $0xe58] sm:$0xff] %v1004
    %1525 = vst [vmem:[#allocation5 + $0xe60] sm:$0xff] %v1005
    %1526 = vst [vmem:[#allocation5 + $0xe68] sm:$0xff] %v1006
    %1527 = vst [vmem:[#allocation5 + $0xe70] sm:$0xff] %v1007
    %1528 = vst [vmem:[#allocation5 + $0xe78] sm:$0xff] %v1008
    %1529 = vst [vmem:[#allocation5 + $0xe80] sm:$0xff] %v1009
    %1530 = vst [vmem:[#allocation5 + $0xe88] sm:$0xff] %v1010
    %1531 = vst [vmem:[#allocation5 + $0xe90] sm:$0xff] %v1011
    %1532 = vst [vmem:[#allocation5 + $0xe98] sm:$0xff] %v1012
    %1533 = vst [vmem:[#allocation5 + $0xea0] sm:$0xff] %v1013
    %1534 = vst [vmem:[#allocation5 + $0xea8] sm:$0xff] %v1014
    %1535 = vst [vmem:[#allocation5 + $0xeb0] sm:$0xff] %v1015
    %1536 = vst [vmem:[#allocation5 + $0xeb8] sm:$0xff] %v1016
    %1537 = vst [vmem:[#allocation5 + $0xec0] sm:$0xff] %v1017
    %1538 = vst [vmem:[#allocation5 + $0xec8] sm:$0xff] %v1018
    %1539 = vst [vmem:[#allocation5 + $0xed0] sm:$0xff] %v1019
    %1540 = vst [vmem:[#allocation5 + $0xed8] sm:$0xff] %v1020
    %1541 = vst [vmem:[#allocation5 + $0xee0] sm:$0xff] %v1021
    %1542 = vst [vmem:[#allocation5 + $0xee8] sm:$0xff] %v1022
    %1543 = vst [vmem:[#allocation5 + $0xef0] sm:$0xff] %v1023
    %1544 = vst [vmem:[#allocation5 + $0xef8] sm:$0xff] %v1024
    %1545 = vst [vmem:[#allocation5 + $0xf00] sm:$0xff] %v1025
    %1546 = vst [vmem:[#allocation5 + $0xf08] sm:$0xff] %v1026
    %1547 = vst [vmem:[#allocation5 + $0xf10] sm:$0xff] %v1027
    %1548 = vst [vmem:[#allocation5 + $0xf18] sm:$0xff] %v1028
    %1549 = vst [vmem:[#allocation5 + $0xf20] sm:$0xff] %v1029
    %1550 = vst [vmem:[#allocation5 + $0xf28] sm:$0xff] %v1030
    %1551 = vst [vmem:[#allocation5 + $0xf30] sm:$0xff] %v1031
    %1552 = vst [vmem:[#allocation5 + $0xf38] sm:$0xff] %v1032
    %1553 = vst [vmem:[#allocation5 + $0xf40] sm:$0xff] %v1033
    %1554 = vst [vmem:[#allocation5 + $0xf48] sm:$0xff] %v1034
    %1555 = vst [vmem:[#allocation5 + $0xf50] sm:$0xff] %v1035
    %1556 = vst [vmem:[#allocation5 + $0xf58] sm:$0xff] %v1036
    %1557 = vst [vmem:[#allocation5 + $0xf60] sm:$0xff] %v1037
    %1558 = vst [vmem:[#allocation5 + $0xf68] sm:$0xff] %v1038
    %1559 = vst [vmem:[#allocation5 + $0xf70] sm:$0xff] %v1039
    %1560 = vst [vmem:[#allocation5 + $0xf78] sm:$0xff] %v1040
    %1561 = vst [vmem:[#allocation5 + $0xf80] sm:$0xff] %v1041
    %1562 = vst [vmem:[#allocation5 + $0xf88] sm:$0xff] %v1042
    %1563 = vst [vmem:[#allocation5 + $0xf90] sm:$0xff] %v1043
    %1564 = vst [vmem:[#allocation5 + $0xf98] sm:$0xff] %v1044
    %1565 = vst [vmem:[#allocation5 + $0xfa0] sm:$0xff] %v1045
    %1566 = vst [vmem:[#allocation5 + $0xfa8] sm:$0xff] %v1046
    %1567 = vst [vmem:[#allocation5 + $0xfb0] sm:$0xff] %v1047
    %1568 = vst [vmem:[#allocation5 + $0xfb8] sm:$0xff] %v1048
    %1569 = vst [vmem:[#allocation5 + $0xfc0] sm:$0xff] %v1049
    %1570 = vst [vmem:[#allocation5 + $0xfc8] sm:$0xff] %v1050
    %1571 = vst [vmem:[#allocation5 + $0xfd0] sm:$0xff] %v1051
    %1572 = vst [vmem:[#allocation5 + $0xfd8] sm:$0xff] %v1052
    %1573 = vst [vmem:[#allocation5 + $0xfe0] sm:$0xff] %v1053
    %1574 = vst [vmem:[#allocation5 + $0xfe8] sm:$0xff] %v1054
    %1575 = vst [vmem:[#allocation5 + $0xff0] sm:$0xff] %v1055
    %1576 = vst [vmem:[#allocation5 + $0xff8] sm:$0xff] %v1056
    %1577 = vst [vmem:[#allocation5 + $0x1000] sm:$0xff] %v1057
    %1578 = vst [vmem:[#allocation5 + $0x1008] sm:$0xff] %v1058
    %1579 = vst [vmem:[#allocation5 + $0x1010] sm:$0xff] %v1059
    %1580 = vst [vmem:[#allocation5 + $0x1018] sm:$0xff] %v1060
    %1581 = vst [vmem:[#allocation5 + $0x1020] sm:$0xff] %v1061
    %1582 = vst [vmem:[#allocation5 + $0x1028] sm:$0xff] %v1062
    %1583 = vst [vmem:[#allocation5 + $0x1030] sm:$0xff] %v1063
    %1584 = vst [vmem:[#allocation5 + $0x1038] sm:$0xff] %v1064
    // Predicated region
    $region10: #{tpu_custom_call.1} parent=1 // pred_check
      _
    $region11: #{tpu_custom_call.1} parent=1 // pred_check_branch
      %1586 = sbr.rel (0) target = $region13
    $region12: #{tpu_custom_call.1} parent=1 // pred_region
      %1588 = vsyncadd [#allocation4], 0
      %s1589 = sshll.u32 [#allocation5], 4
      %s1590 = int_to_ptr.vmem [resolvable:$true] %s1589
      %s1591 = sshll.u32 %s1, 4
      %s1592 = int_to_ptr.hbm [resolvable:$true] %s1591
      %1597 = dma.vmem_to_hbm [thread:$0]  %s1590, 66560, %s1592, [#allocation4], 1024, 1024, 64
    $region13: #{tpu_custom_call.1} parent=1 // pred_fallthru
      _
    // Predicated region
    $region14: #{tpu_custom_call.1} parent=1 // pred_check
      _
    $region15: #{tpu_custom_call.1} parent=1 // pred_check_branch
      %1599 = sbr.rel (0) target = $region17
    $region16: #{tpu_custom_call.1} parent=1 // pred_region
      %1601 = dma.done [#allocation4], 66560
    $region17: #{tpu_custom_call.1} parent=1 // pred_fallthru
      _
    %1602 = vsyncpa [#allocation3], 1
    %1603 = vsyncpa [#allocation4], 1

</llo_original>
